<compile_context>
chip_gen: v7x
topology: tpu7x:2x2x1
jax: 0.10.0
libtpu: 0.0.40
codegen_flags: <defaults>
</compile_context>

<pallas_src>
import functools

import jax
import jax.numpy as jnp
from jax.experimental import pallas as pl
from jax.experimental.pallas import tpu as pltpu


def _round_up(a, b):
    return ((a + b - 1) // b) * b


def _cdiv(a, b):
    return (a + b - 1) // b


def make_mlp_kernel(in_dim, out_dim, num_layers, bf16_relu):
    """Builds the fused MLP kernel for one (tile, in_dim) activation slab."""

    def mlp_kernel(x_ref, w_ref, b_ref, o_ref):
        # x_ref: (tile, in_dim) f32
        # w_ref: (L, width, width) bf16 — layer l holds W_l.T in [:in_l, :out_l], zero pad
        # b_ref: (L, 1, width) f32     — layer l bias in [:, :out_l], zero pad
        # o_ref: (tile, out_dim) f32
        width = w_ref.shape[2]
        h = x_ref[...].astype(jnp.bfloat16)  # VPU cast; MXU wants bf16
        kdim = in_dim
        for l in range(num_layers):
            last = l == num_layers - 1
            w = w_ref[l, :kdim, :out_dim] if last else w_ref[l, :kdim, :]
            b = b_ref[l, :, :out_dim] if last else b_ref[l]
            # RHS (the small weight) is the stationary MXU operand; sample rows stream.
            z = jnp.dot(h, w, preferred_element_type=jnp.float32) + b
            if last:
                o_ref[...] = z.astype(o_ref.dtype)
            elif bf16_relu:
                # cast-then-max is bit-identical to max-then-cast for ReLU and halves
                # the VALU vreg count on chips with a bf16 VALU (v6e/v7x).
                h = jnp.maximum(z.astype(jnp.bfloat16), 0)
            else:
                h = jnp.maximum(z, 0.0).astype(jnp.bfloat16)
            kdim = width  # zero-padded hidden columns stay exactly zero through ReLU
        return

    return mlp_kernel


def pack_params(params):
    """Pack per-layer (W(out,in), b(out,)) into zero-padded transposed slabs.

    Returns (w_packed bf16 (L, width, width) holding W_l.T, b_packed f32 (L, 1, width),
    width).  Padded weight rows/cols and padded biases are exactly zero, which makes
    the padded compute exact (zero hidden columns remain zero through ReLU).
    """
    num_layers = len(params)
    in_dim = params[0][0].shape[1]
    width = _round_up(max([in_dim] + [w.shape[0] for (w, _) in params]), 8)
    w_packed = jnp.zeros((num_layers, width, width), jnp.float32)
    b_packed = jnp.zeros((num_layers, 1, width), jnp.float32)
    for l, (w, b) in enumerate(params):
        o, i = w.shape
        w_packed = w_packed.at[l, :i, :o].set(w.T)
        b_packed = b_packed.at[l, 0, :o].set(b)
    return w_packed.astype(jnp.bfloat16), b_packed, width


@functools.partial(jax.jit, static_argnames=("out_dim", "tile_cols", "bf16_relu"))
def mlp_forward(x, w_packed, b_packed, *, out_dim, tile_cols=4096, bf16_relu=True):
    """x: (N, in_dim) float32; (w_packed, b_packed) from pack_params()."""
    N, in_dim = x.shape
    num_layers, width, _ = w_packed.shape

    # Sample tiling: big tiles amortize per-step overhead; for N >= 256 force >= 2
    # blocks so both v7x TensorCores get work. Blocks stay 8/128-aligned; the last
    # (possibly partial) block is handled by Pallas' boundary semantics.
    tile_cols = max(128, _round_up(tile_cols, 128))
    if N >= 256:
        tile = min(tile_cols, _round_up(_cdiv(N, 2), 128))
    else:
        tile = _round_up(N, 8)
    grid = _cdiv(N, tile)

    kernel = make_mlp_kernel(in_dim, out_dim, num_layers, bf16_relu)

    hidden = width
    flops = 2 * N * (in_dim * hidden
                     + max(num_layers - 2, 0) * hidden * hidden
                     + hidden * out_dim)
    bytes_accessed = (N * in_dim * 4 + N * out_dim * 4
                      + w_packed.size * 2 + b_packed.size * 4)

    out = pl.pallas_call(
        kernel,
        out_shape=jax.ShapeDtypeStruct((N, out_dim), jnp.float32),
        grid_spec=pltpu.PrefetchScalarGridSpec(
            num_scalar_prefetch=0,
            grid=(grid,),
            in_specs=[
                pl.BlockSpec((tile, in_dim), lambda i: (i, 0)),
                pl.BlockSpec((num_layers, width, width), lambda i: (0, 0, 0)),
                pl.BlockSpec((num_layers, 1, width), lambda i: (0, 0, 0)),
            ],
            out_specs=pl.BlockSpec((tile, out_dim), lambda i: (i, 0)),
            scratch_shapes=[],
        ),
        compiler_params=pltpu.CompilerParams(
            dimension_semantics=("parallel",),
            vmem_limit_bytes=32 * 1024 * 1024),
        cost_estimate=pl.CostEstimate(
            flops=flops, transcendentals=0, bytes_accessed=bytes_accessed),
    )(x, w_packed, b_packed)

    return out.astype(x.dtype)


def init_mlp_params(key, in_dim, out_dim, hidden_list):
    """Mimic nn.Linear default init (uniform +-1/sqrt(fan_in)); PyTorch (out, in) layout."""
    params = []
    lastv = in_dim
    for h in list(hidden_list) + [out_dim]:
        key, kw, kb = jax.random.split(key, 3)
        bound = 1.0 / (lastv ** 0.5)
        w = jax.random.uniform(kw, (h, lastv), jnp.float32, -bound, bound)
        b = jax.random.uniform(kb, (h,), jnp.float32, -bound, bound)
        params.append((w, b))
        lastv = h
    return params


def mlp_reference(x, params):
    """Pure-JAX reference reproducing the kernel's bf16-input / f32-accumulate numerics."""
    bf = lambda v: v.astype(jnp.bfloat16).astype(jnp.float32)
    h = bf(x)
    for i, (w, b) in enumerate(params):
        h = jnp.dot(h, bf(w).T, precision=jax.lax.Precision.HIGHEST) + b
        if i < len(params) - 1:
            h = bf(jnp.maximum(h, 0.0))
    return h


if __name__ == "__main__":
    # Shapes consistent with the module: MLP(in_dim=16, out_dim=4, hidden_list=[32,32,32])
    in_dim, out_dim, hidden_list = 16, 4, [32, 32, 32]
    N = 300  # not a multiple of 128 -> exercises the partial-tile path and grid=2 split

    key = jax.random.PRNGKey(0)
    key, kx = jax.random.split(key)
    x = jax.random.normal(kx, (N, in_dim), jnp.float32)
    params = init_mlp_params(key, in_dim, out_dim, hidden_list)

    # Pack the resident weights once (outside jit); f32 ReLU on v5e (no bf16 VALU).
    w_packed, b_packed, _ = pack_params(params)
    bf16_relu = "v5" not in jax.devices()[0].device_kind.lower()

    out = jax.block_until_ready(
        mlp_forward(x, w_packed, b_packed, out_dim=out_dim, bf16_relu=bf16_relu))
    ref = mlp_reference(x, params)

    assert out.shape == (N, out_dim)
    max_err = float(jnp.max(jnp.abs(out - ref)))
    assert jnp.allclose(out, ref, atol=1e-3, rtol=1e-3), f"mismatch vs reference, max_err={max_err}"

    print("KERNEL_OK")
</pallas_src>

<mosaic_0001>
module attributes {stable_mosaic.version = 11 : i64} {
  func.func @mlp_kernel(%arg0: i32, %arg1: memref<256x16xf32, #tpu.memory_space<vmem>>, %arg2: memref<4x32x32xbf16, #tpu.memory_space<vmem>>, %arg3: memref<4x1x32xf32, #tpu.memory_space<vmem>>, %arg4: memref<256x4xf32, #tpu.memory_space<vmem>>) attributes {dimension_semantics = [#tpu.dimension_semantics<parallel>], iteration_bounds = array<i64: 2>, scalar_prefetch = 0 : i64, scratch_operands = 0 : i64, tpu.core_type = #tpu.core_type<tc>, window_params = [{transform_indices = @transform_0, window_bounds = array<i64: 256, 16>}, {pipeline_mode = #tpu.pipeline_mode<synchronous>, transform_indices = @transform_1, window_bounds = array<i64: 4, 32, 32>}, {pipeline_mode = #tpu.pipeline_mode<synchronous>, transform_indices = @transform_2, window_bounds = array<i64: 4, 1, 32>}, {transform_indices = @transform_3, window_bounds = array<i64: 256, 4>}]} {
    %c0 = arith.constant 0 : index
    %c0_0 = arith.constant 0 : index
    %0 = vector.load %arg1[%c0, %c0_0] : memref<256x16xf32, #tpu.memory_space<vmem>>, vector<256x16xf32>
    %1 = arith.truncf %0 : vector<256x16xf32> to vector<256x16xbf16>
    %c0_1 = arith.constant 0 : index
    %c0_2 = arith.constant 0 : index
    %c0_3 = arith.constant 0 : index
    %2 = vector.load %arg2[%c0_1, %c0_2, %c0_3] : memref<4x32x32xbf16, #tpu.memory_space<vmem>>, vector<1x16x32xbf16>
    %3 = vector.shape_cast %2 : vector<1x16x32xbf16> to vector<16x32xbf16>
    %c0_4 = arith.constant 0 : index
    %c0_5 = arith.constant 0 : index
    %c0_6 = arith.constant 0 : index
    %4 = vector.load %arg3[%c0_4, %c0_5, %c0_6] : memref<4x1x32xf32, #tpu.memory_space<vmem>>, vector<1x1x32xf32>
    %5 = vector.shape_cast %4 : vector<1x1x32xf32> to vector<1x32xf32>
    %cst = arith.constant dense<0.000000e+00> : vector<256x32xf32>
    %6 = tpu.matmul %1, %3, %cst {dimension_numbers = #tpu.dot_dimension_numbers<[1], [0], [0], [1], [0, 0, 1, 1], [], []>} : vector<256x16xbf16>, vector<16x32xbf16>, vector<256x32xf32> -> vector<256x32xf32>
    %7 = vector.broadcast %5 : vector<1x32xf32> to vector<256x32xf32>
    %8 = arith.addf %6, %7 : vector<256x32xf32>
    %9 = arith.truncf %8 : vector<256x32xf32> to vector<256x32xbf16>
    %cst_7 = arith.constant 0.000000e+00 : bf16
    %10 = vector.broadcast %cst_7 : bf16 to vector<256x32xbf16>
    %11 = arith.maximumf %9, %10 : vector<256x32xbf16>
    %c1 = arith.constant 1 : index
    %c0_8 = arith.constant 0 : index
    %c0_9 = arith.constant 0 : index
    %12 = vector.load %arg2[%c1, %c0_8, %c0_9] : memref<4x32x32xbf16, #tpu.memory_space<vmem>>, vector<1x32x32xbf16>
    %13 = vector.shape_cast %12 : vector<1x32x32xbf16> to vector<32x32xbf16>
    %c1_10 = arith.constant 1 : index
    %c0_11 = arith.constant 0 : index
    %c0_12 = arith.constant 0 : index
    %14 = vector.load %arg3[%c1_10, %c0_11, %c0_12] : memref<4x1x32xf32, #tpu.memory_space<vmem>>, vector<1x1x32xf32>
    %15 = vector.shape_cast %14 : vector<1x1x32xf32> to vector<1x32xf32>
    %cst_13 = arith.constant dense<0.000000e+00> : vector<256x32xf32>
    %16 = tpu.matmul %11, %13, %cst_13 {dimension_numbers = #tpu.dot_dimension_numbers<[1], [0], [0], [1], [0, 0, 1, 1], [], []>} : vector<256x32xbf16>, vector<32x32xbf16>, vector<256x32xf32> -> vector<256x32xf32>
    %17 = vector.broadcast %15 : vector<1x32xf32> to vector<256x32xf32>
    %18 = arith.addf %16, %17 : vector<256x32xf32>
    %19 = arith.truncf %18 : vector<256x32xf32> to vector<256x32xbf16>
    %cst_14 = arith.constant 0.000000e+00 : bf16
    %20 = vector.broadcast %cst_14 : bf16 to vector<256x32xbf16>
    %21 = arith.maximumf %19, %20 : vector<256x32xbf16>
    %c2 = arith.constant 2 : index
    %c0_15 = arith.constant 0 : index
    %c0_16 = arith.constant 0 : index
    %22 = vector.load %arg2[%c2, %c0_15, %c0_16] : memref<4x32x32xbf16, #tpu.memory_space<vmem>>, vector<1x32x32xbf16>
    %23 = vector.shape_cast %22 : vector<1x32x32xbf16> to vector<32x32xbf16>
    %c2_17 = arith.constant 2 : index
    %c0_18 = arith.constant 0 : index
    %c0_19 = arith.constant 0 : index
    %24 = vector.load %arg3[%c2_17, %c0_18, %c0_19] : memref<4x1x32xf32, #tpu.memory_space<vmem>>, vector<1x1x32xf32>
    %25 = vector.shape_cast %24 : vector<1x1x32xf32> to vector<1x32xf32>
    %cst_20 = arith.constant dense<0.000000e+00> : vector<256x32xf32>
    %26 = tpu.matmul %21, %23, %cst_20 {dimension_numbers = #tpu.dot_dimension_numbers<[1], [0], [0], [1], [0, 0, 1, 1], [], []>} : vector<256x32xbf16>, vector<32x32xbf16>, vector<256x32xf32> -> vector<256x32xf32>
    %27 = vector.broadcast %25 : vector<1x32xf32> to vector<256x32xf32>
    %28 = arith.addf %26, %27 : vector<256x32xf32>
    %29 = arith.truncf %28 : vector<256x32xf32> to vector<256x32xbf16>
    %cst_21 = arith.constant 0.000000e+00 : bf16
    %30 = vector.broadcast %cst_21 : bf16 to vector<256x32xbf16>
    %31 = arith.maximumf %29, %30 : vector<256x32xbf16>
    %c3 = arith.constant 3 : index
    %c0_22 = arith.constant 0 : index
    %c0_23 = arith.constant 0 : index
    %32 = vector.load %arg2[%c3, %c0_22, %c0_23] : memref<4x32x32xbf16, #tpu.memory_space<vmem>>, vector<1x32x4xbf16>
    %33 = vector.shape_cast %32 : vector<1x32x4xbf16> to vector<32x4xbf16>
    %c3_24 = arith.constant 3 : index
    %c0_25 = arith.constant 0 : index
    %c0_26 = arith.constant 0 : index
    %34 = vector.load %arg3[%c3_24, %c0_25, %c0_26] : memref<4x1x32xf32, #tpu.memory_space<vmem>>, vector<1x1x4xf32>
    %35 = vector.shape_cast %34 : vector<1x1x4xf32> to vector<1x4xf32>
    %cst_27 = arith.constant dense<0.000000e+00> : vector<256x4xf32>
    %36 = tpu.matmul %31, %33, %cst_27 {dimension_numbers = #tpu.dot_dimension_numbers<[1], [0], [0], [1], [0, 0, 1, 1], [], []>} : vector<256x32xbf16>, vector<32x4xbf16>, vector<256x4xf32> -> vector<256x4xf32>
    %37 = vector.broadcast %35 : vector<1x4xf32> to vector<256x4xf32>
    %38 = arith.addf %36, %37 : vector<256x4xf32>
    %c0_28 = arith.constant 0 : index
    %c0_29 = arith.constant 0 : index
    %39 = vector.load %arg4[%c0_28, %c0_29] : memref<256x4xf32, #tpu.memory_space<vmem>>, vector<256x4xf32>
    tpu.vector_store %arg4[%c0_28, %c0_29], %38 {strides = array<i32>} : memref<256x4xf32, #tpu.memory_space<vmem>>, vector<256x4xf32>,
    return
  }
  func.func @transform_0(%arg0: i32) -> (i32, i32) {
    %c0_i32 = arith.constant 0 : i32
    %c0_i32_0 = arith.constant 0 : i32
    return %arg0, %c0_i32 : i32, i32
  }
  func.func @transform_1(%arg0: i32) -> (i32, i32, i32) {
    %c0_i32 = arith.constant 0 : i32
    %c0_i32_0 = arith.constant 0 : i32
    %c0_i32_1 = arith.constant 0 : i32
    %c0_i32_2 = arith.constant 0 : i32
    return %c0_i32, %c0_i32_0, %c0_i32_1 : i32, i32, i32
  }
  func.func @transform_2(%arg0: i32) -> (i32, i32, i32) {
    %c0_i32 = arith.constant 0 : i32
    %c0_i32_0 = arith.constant 0 : i32
    %c0_i32_1 = arith.constant 0 : i32
    %c0_i32_2 = arith.constant 0 : i32
    return %c0_i32, %c0_i32_0, %c0_i32_1 : i32, i32, i32
  }
  func.func @transform_3(%arg0: i32) -> (i32, i32) {
    %c0_i32 = arith.constant 0 : i32
    %c0_i32_0 = arith.constant 0 : i32
    return %arg0, %c0_i32 : i32, i32
  }
}

</mosaic_0001>

<llo_original>
// kernel: mlp_forward.1
$region0: #{mlp_forward.1}
  #allocation0 [shape = 'u32[]', space=smem, size = 0x4, offset = 0x4, fixed_abs, tag = 'smem constant byte address 0x4 - core index']
  #allocation1 [shape = 'u32[144,128]{1,0:T(1,128)}', space=vmem, size = 0x12000, scoped, tag = 'internal scratch']
  %s0 = inlined_call_operand.vmem [shape: f32[300,16], index: 0, kind: input, shape index: {}]
  %s1 = inlined_call_operand.vmem [shape: bf16[4,32,32], index: 1, kind: input, shape index: {}]
  %s2 = inlined_call_operand.vmem [shape: f32[4,1,32], index: 2, kind: input, shape index: {}]
  %s3 = inlined_call_operand.vmem [shape: f32[300,4], index: 3, kind: output, shape index: {}]
  %s4 = sld [smem:[#allocation0]]
  $region93: #{mlp_forward.1} parent=0
    _
  %s6 = ssub.s32 1, %s4
  %s7 = scalar_select 0, %s6, %s4
  $region1: #{mlp_forward.1} parent=0
    #allocation2 [shape = 'u8[262144]{0}', space=vmem, size = 0x40000, scoped, tag = 'output window, operand 0']
    loop: start=0, step=1, limit=4
    $region2: #{mlp_forward.1} parent=1 // loop_pre_header
      _
    $region3: #{mlp_forward.1} parent=1 // loop_header
      %s9 = sphi 0, %s13
      %p10 = scmp.ge.s32.totalorder %s9, 4
      %s19 = sphi 0, %s21
      %s22 = sphi 0, %s19
      %s23 = sphi 0, %s22
      %s39 = sphi 0, %s23
      %s43 = sphi 0, %s43
      %s45 = sphi 0, %s43
      %s46 = sphi 0, %s45
      %s60 = sphi 0, %s46
      %s64 = sphi 0, %s64
      %s66 = sphi 0, %s64
      %s67 = sphi 0, %s66
      %s81 = sphi 0, %s67
      %s87 = sphi 0, %s89
      %s90 = sphi 0, %s87
      %s91 = sphi 0, %s90
      %s107 = sphi 0, %s91
    $region4: #{mlp_forward.1} parent=1 // loop_header_branch
      %12 = sbr.rel (%p10) target = $region8
    $region5: #{mlp_forward.1} parent=1 // loop_body
      %s14 = ssub.s32 %s9, 1
      %s15 = ssub.s32 %s9, 2
      %s16 = sadd.s32 %s9, 1
      %s17 = ssub.s32 %s9, %s16
      %p18 = scmp.eq.s32.totalorder %s17, 0
      %s20 = sadd.s32 %s19, 1
      %s21 = scalar_select %p18, %s19, %s20
      %p24 = pneg %p18
      %p25 = scmp.eq.s32.totalorder %s9, 1
      %p26 = por %p24, %p25
      %p27 = scmp.ne.s32.totalorder %s19, %s22
      %p28 = scmp.eq.s32.totalorder %s9, 0
      %p29 = por %p27, %p28
      %p30 = scmp.ne.s32.totalorder %s19, %s22
      %p31 = scmp.eq.s32.totalorder %s14, 1
      %p32 = por %p30, %p31
      %p33 = scmp.ne.s32.totalorder %s22, %s23
      %p34 = scmp.eq.s32.totalorder %s14, 0
      %p35 = por %p33, %p34
      %p36 = scmp.ne.s32.totalorder %s22, %s23
      %p37 = scmp.eq.s32.totalorder %s15, 1
      %p38 = por %p36, %p37
      %p40 = scmp.ne.s32.totalorder %s23, %s39
      %p41 = scmp.eq.s32.totalorder %s15, 0
      %p42 = por %p40, %p41
      %s44 = sadd.s32 %s43, 1
      %p47 = scmp.eq.s32.totalorder %s9, 1
      %p48 = scmp.ne.s32.totalorder %s43, %s45
      %p49 = scmp.eq.s32.totalorder %s9, 0
      %p50 = por %p48, %p49
      %p51 = scmp.ne.s32.totalorder %s43, %s45
      %p52 = scmp.eq.s32.totalorder %s14, 1
      %p53 = por %p51, %p52
      %p54 = scmp.ne.s32.totalorder %s45, %s46
      %p55 = scmp.eq.s32.totalorder %s14, 0
      %p56 = por %p54, %p55
      %p57 = scmp.ne.s32.totalorder %s45, %s46
      %p58 = scmp.eq.s32.totalorder %s15, 1
      %p59 = por %p57, %p58
      %p61 = scmp.ne.s32.totalorder %s46, %s60
      %p62 = scmp.eq.s32.totalorder %s15, 0
      %p63 = por %p61, %p62
      %s65 = sadd.s32 %s64, 1
      %p68 = scmp.eq.s32.totalorder %s9, 1
      %p69 = scmp.ne.s32.totalorder %s64, %s66
      %p70 = scmp.eq.s32.totalorder %s9, 0
      %p71 = por %p69, %p70
      %p72 = scmp.ne.s32.totalorder %s64, %s66
      %p73 = scmp.eq.s32.totalorder %s14, 1
      %p74 = por %p72, %p73
      %p75 = scmp.ne.s32.totalorder %s66, %s67
      %p76 = scmp.eq.s32.totalorder %s14, 0
      %p77 = por %p75, %p76
      %p78 = scmp.ne.s32.totalorder %s66, %s67
      %p79 = scmp.eq.s32.totalorder %s15, 1
      %p80 = por %p78, %p79
      %p82 = scmp.ne.s32.totalorder %s67, %s81
      %p83 = scmp.eq.s32.totalorder %s15, 0
      %p84 = por %p82, %p83
      %s85 = ssub.s32 %s9, %s16
      %p86 = scmp.eq.s32.totalorder %s85, 0
      %s88 = sadd.s32 %s87, 1
      %s89 = scalar_select %p86, %s87, %s88
      %p92 = pneg %p86
      %p93 = scmp.eq.s32.totalorder %s9, 1
      %p94 = por %p92, %p93
      %p95 = scmp.ne.s32.totalorder %s87, %s90
      %p96 = scmp.eq.s32.totalorder %s9, 0
      %p97 = por %p95, %p96
      %p98 = scmp.ne.s32.totalorder %s87, %s90
      %p99 = scmp.eq.s32.totalorder %s14, 1
      %p100 = por %p98, %p99
      %p101 = scmp.ne.s32.totalorder %s90, %s91
      %p102 = scmp.eq.s32.totalorder %s14, 0
      %p103 = por %p101, %p102
      %p104 = scmp.ne.s32.totalorder %s90, %s91
      %p105 = scmp.eq.s32.totalorder %s15, 1
      %p106 = por %p104, %p105
      %p108 = scmp.ne.s32.totalorder %s91, %s107
      %p109 = scmp.eq.s32.totalorder %s15, 0
      %p110 = por %p108, %p109
      %p111 = scmp.le.s32.totalorder 1, %s9
      %p112 = scmp.lt.s32.totalorder %s9, 3
      %p113 = pnand %p111, %p112
      %p114 = pneg %p113
      // Predicated region
      $region9: #{mlp_forward.1} parent=5 // pred_check
        _
      $region10: #{mlp_forward.1} parent=5 // pred_check_branch
        %116 = sbr.rel (%p113) target = $region12
      $region11: #{mlp_forward.1} parent=5 // pred_region
        %s117 = ssub.s32 %s9, 1
        // Predicated region
        $region13: #{mlp_forward.1} parent=11 // pred_check
          %p118 = pneg %p56
        $region14: #{mlp_forward.1} parent=11 // pred_check_branch
          %120 = sbr.rel (%p118) target = $region16
        $region15: #{mlp_forward.1} parent=11 // pred_region
          _
        $region16: #{mlp_forward.1} parent=11 // pred_fallthru
          _
        // Predicated region
        $region17: #{mlp_forward.1} parent=11 // pred_check
          %p121 = pneg %p77
        $region18: #{mlp_forward.1} parent=11 // pred_check_branch
          %123 = sbr.rel (%p121) target = $region20
        $region19: #{mlp_forward.1} parent=11 // pred_region
          _
        $region20: #{mlp_forward.1} parent=11 // pred_fallthru
          _
      $region12: #{mlp_forward.1} parent=5 // pred_fallthru
        _
      %p124 = scmp.lt.s32.totalorder %s9, 2
      // Predicated region
      $region21: #{mlp_forward.1} parent=5 // pred_check
        %p125 = pneg %p124
      $region22: #{mlp_forward.1} parent=5 // pred_check_branch
        %127 = sbr.rel (%p125) target = $region24
      $region23: #{mlp_forward.1} parent=5 // pred_region
        // Predicated region
        $region25: #{mlp_forward.1} parent=23 // pred_check
          %p128 = pneg %p29
        $region26: #{mlp_forward.1} parent=23 // pred_check_branch
          %130 = sbr.rel (%p128) target = $region28
        $region27: #{mlp_forward.1} parent=23 // pred_region
          %s131 = smul.u32 32, %s9
          %s132 = ssub.s32 38, %s131
          %p133 = scmp.lt.s32.totalorder %s132, 32
          %s134 = scalar_select %p133, %s132, 32
          %s135 = smul.u32 128, %s134
          %p136 = scmp.lt.s32.totalorder %s131, 37
          %s137 = scalar_select %p136, %s131, 37
          %s138 = smul.addr %s137, 8
          %s139 = scalar_lea.vmem %s0, %s138
          %s140 = smul.u32 32, %s9
          %s141 = ssub.s32 38, %s140
          %p142 = scmp.lt.s32.totalorder %s141, 32
          %s143 = scalar_select %p142, %s141, 32
          %s144 = smul.u32 128, %s143
        $region28: #{mlp_forward.1} parent=23 // pred_fallthru
          _
      $region24: #{mlp_forward.1} parent=5 // pred_fallthru
        _
      %p145 = scmp.le.s32.totalorder 1, %s9
      %p146 = scmp.lt.s32.totalorder %s9, 3
      %p147 = pnand %p145, %p146
      %p148 = pneg %p147
      // Predicated region
      $region29: #{mlp_forward.1} parent=5 // pred_check
        _
      $region30: #{mlp_forward.1} parent=5 // pred_check_branch
        %150 = sbr.rel (%p147) target = $region32
      $region31: #{mlp_forward.1} parent=5 // pred_region
        %s151 = ssub.s32 %s9, 1
        %s152 = smul.u32 32, %s14
        %s153 = ssub.s32 38, %s152
        %p154 = scmp.lt.s32.totalorder %s153, 32
        %s155 = scalar_select %p154, %s153, 32
        %s156 = smul.u32 128, %s155
        %p157 = scmp.lt.s32.totalorder %s152, 37
        %s158 = scalar_select %p157, %s152, 37
        %s159 = smul.addr %s158, 8
        %s160 = scalar_lea.vmem %s0, %s159
        %p161 = pneg %p35
        %p162 = pneg %p32
        %p163 = pneg %p56
        %p164 = pneg %p53
        %p165 = pneg %p77
        %p166 = pneg %p74
        %p167 = pneg %p103
        %p168 = pneg %p100
        %s169 = sand.u32 %s90, 1
        %s170 = sand.u32 %s90, 1
        %s171 = smul.addr %s170, 256
        %s172 = scalar_lea.vmem [#allocation2], %s171
        %s173 = smul.u32 32, %s14
        %s174 = ssub.s32 38, %s173
        %p175 = scmp.lt.s32.totalorder %s174, 32
        %s176 = scalar_select %p175, %s174, 32
        %s177 = smul.u32 128, %s176
        %p178 = scmp.lt.s32.totalorder %s173, 37
        %s179 = scalar_select %p178, %s173, 37
        %s180 = smul.addr %s179, 8
        %s181 = scalar_lea.vmem %s0, %s180
        %s182 = smul.u32 32, %s14
        %s183 = ssub.s32 38, %s182
        %p184 = scmp.lt.s32.totalorder %s183, 32
        %s185 = scalar_select %p184, %s183, 32
        %s186 = smul.u32 128, %s185
        %s187 = smul.u32 32, %s14
        %s188 = ssub.s32 38, %s187
        %p189 = scmp.lt.s32.totalorder %s188, 32
        %s190 = scalar_select %p189, %s188, 32
        %s191 = smul.u32 128, %s190
        %v193 = vld [vmem:[%s181] sm:$0xff]
        %v194 = vld [vmem:[%s181 + $0x8] sm:$0xff]
        %v195 = vld [vmem:[%s181 + $0x10] sm:$0xff]
        %v196 = vld [vmem:[%s181 + $0x18] sm:$0xff]
        %v197 = vld [vmem:[%s181 + $0x20] sm:$0xff]
        %v198 = vld [vmem:[%s181 + $0x28] sm:$0xff]
        %v199 = vld [vmem:[%s181 + $0x30] sm:$0xff]
        %v200 = vld [vmem:[%s181 + $0x38] sm:$0xff]
        %v201 = vld [vmem:[%s181 + $0x40] sm:$0xff]
        %v202 = vld [vmem:[%s181 + $0x48] sm:$0xff]
        %v203 = vld [vmem:[%s181 + $0x50] sm:$0xff]
        %v204 = vld [vmem:[%s181 + $0x58] sm:$0xff]
        %v205 = vld [vmem:[%s181 + $0x60] sm:$0xff]
        %v206 = vld [vmem:[%s181 + $0x68] sm:$0xff]
        %v207 = vld [vmem:[%s181 + $0x70] sm:$0xff]
        %v208 = vld [vmem:[%s181 + $0x78] sm:$0xff]
        %v209 = vld [vmem:[%s181 + $0x80] sm:$0xff]
        %v210 = vld [vmem:[%s181 + $0x88] sm:$0xff]
        %v211 = vld [vmem:[%s181 + $0x90] sm:$0xff]
        %v212 = vld [vmem:[%s181 + $0x98] sm:$0xff]
        %v213 = vld [vmem:[%s181 + $0xa0] sm:$0xff]
        %v214 = vld [vmem:[%s181 + $0xa8] sm:$0xff]
        %v215 = vld [vmem:[%s181 + $0xb0] sm:$0xff]
        %v216 = vld [vmem:[%s181 + $0xb8] sm:$0xff]
        %v217 = vld [vmem:[%s181 + $0xc0] sm:$0xff]
        %v218 = vld [vmem:[%s181 + $0xc8] sm:$0xff]
        %v219 = vld [vmem:[%s181 + $0xd0] sm:$0xff]
        %v220 = vld [vmem:[%s181 + $0xd8] sm:$0xff]
        %v221 = vld [vmem:[%s181 + $0xe0] sm:$0xff]
        %v222 = vld [vmem:[%s181 + $0xe8] sm:$0xff]
        %v223 = vld [vmem:[%s181 + $0xf0] sm:$0xff]
        %v224 = vld [vmem:[%s181 + $0xf8] sm:$0xff]
        %v225 = vpack.c.bf16 %v194, %v193
        %v226 = vpack.c.bf16 %v196, %v195
        %v227 = vpack.c.bf16 %v198, %v197
        %v228 = vpack.c.bf16 %v200, %v199
        %v229 = vpack.c.bf16 %v202, %v201
        %v230 = vpack.c.bf16 %v204, %v203
        %v231 = vpack.c.bf16 %v206, %v205
        %v232 = vpack.c.bf16 %v208, %v207
        %v233 = vpack.c.bf16 %v210, %v209
        %v234 = vpack.c.bf16 %v212, %v211
        %v235 = vpack.c.bf16 %v214, %v213
        %v236 = vpack.c.bf16 %v216, %v215
        %v237 = vpack.c.bf16 %v218, %v217
        %v238 = vpack.c.bf16 %v220, %v219
        %v239 = vpack.c.bf16 %v222, %v221
        %v240 = vpack.c.bf16 %v224, %v223
        %v241 = vld [vmem:[%s1] sm:$0xf]
        %v242 = vld [vmem:[%s1 + $0x4] sm:$0xf]
        %v243 = vld [vmem:[%s2] sm:$0x1]
        %v245 = vlaneseq
        %v246 = vshrl.u32 %v245, 7
        %v247 = vsub.s32 0, %v246
        %v248 = vrot.slane %v243, %v247
        %v252 = vunpack.c.l.b16 %v241
        %v253 = vunpack.c.l.b16 %v242
        %v254 = vpack.c.b16 %v253, %v252
        %vm256 = vcmask 130048
        %v258 = vsel %vm256, %v225, 0
        %v261 = vsel %vm256, %v226, 0
        %v264 = vsel %vm256, %v227, 0
        %v267 = vsel %vm256, %v228, 0
        %v270 = vsel %vm256, %v229, 0
        %v273 = vsel %vm256, %v230, 0
        %v276 = vsel %vm256, %v231, 0
        %v279 = vsel %vm256, %v232, 0
        %v282 = vsel %vm256, %v233, 0
        %v285 = vsel %vm256, %v234, 0
        %v288 = vsel %vm256, %v235, 0
        %v291 = vsel %vm256, %v236, 0
        %v294 = vsel %vm256, %v237, 0
        %v297 = vsel %vm256, %v238, 0
        %v300 = vsel %vm256, %v239, 0
        %v303 = vsel %vm256, %v240, 0
        %305 = vmatprep.subr.bf16.mxu0 0
        %306 = vmatpush1.bf16.msra.mxu0 %v254
        %307 = vmatprep.subr.bf16.mxu0 0
        %308 = vmatpush1.bf16.msra.mxu0 0
        %309 = vmatprep.subr.bf16.mxu0 0
        %310 = vmatpush1.bf16.msra.mxu0 0
        %311 = vmatprep.subr.bf16.mxu0 0
        %312 = vmatpush1.bf16.msra.mxu0 0
        %313 = vmatprep.subr.bf16.mxu0 0
        %314 = vmatpush1.bf16.msra.mxu0 0
        %315 = vmatprep.subr.bf16.mxu0 0
        %316 = vmatpush1.bf16.msra.mxu0 0
        %317 = vmatprep.subr.bf16.mxu0 0
        %318 = vmatpush1.bf16.msra.mxu0 0
        %319 = vmatprep.subr.bf16.mxu0 0
        %320 = vmatpush1.bf16.msra.mxu0 0
        %321 = vmatprep.subr.bf16.mxu0 0
        %322 = vmatpush1.bf16.msra.mxu0 0
        %323 = vmatprep.subr.bf16.mxu0 0
        %324 = vmatpush1.bf16.msra.mxu0 0
        %325 = vmatprep.subr.bf16.mxu0 0
        %326 = vmatpush1.bf16.msra.mxu0 0
        %327 = vmatprep.subr.bf16.mxu0 0
        %328 = vmatpush1.bf16.msra.mxu0 0
        %329 = vmatprep.subr.bf16.mxu0 0
        %330 = vmatpush1.bf16.msra.mxu0 0
        %331 = vmatprep.subr.bf16.mxu0 0
        %332 = vmatpush1.bf16.msra.mxu0 0
        %333 = vmatprep.subr.bf16.mxu0 0
        %334 = vmatpush1.bf16.msra.mxu0 0
        %335 = vmatprep.subr.bf16.mxu0 0
        %336 = vmatpush1.bf16.msra.mxu0 0
        %337 = vmatprep.mubr.bf16.mxu0 0
        %338 = vmatmul.mubr.bf16.gmra.mrb[0].mxu0 %v258
        %v339 = vpop.f32.mrb[0].mxu0
        %v340 = vadd.f32 %v248, %v339
        %v341 = vpop.f32.mrb[0].mxu0
        %v342 = vpop.f32.mrb[0].mxu0
        %v343 = vadd.f32 %v248, %v342
        %v344 = vpop.f32.mrb[0].mxu0
        %345 = vmatprep.mubr.bf16.mxu0 0
        %346 = vmatmul.mubr.bf16.gmra.mrb[0].mxu0 %v261
        %v347 = vpop.f32.mrb[0].mxu0
        %v348 = vadd.f32 %v248, %v347
        %v349 = vpop.f32.mrb[0].mxu0
        %v350 = vpop.f32.mrb[0].mxu0
        %v351 = vadd.f32 %v248, %v350
        %v352 = vpop.f32.mrb[0].mxu0
        %353 = vmatprep.mubr.bf16.mxu0 0
        %354 = vmatmul.mubr.bf16.gmra.mrb[0].mxu0 %v264
        %v355 = vpop.f32.mrb[0].mxu0
        %v356 = vadd.f32 %v248, %v355
        %v357 = vpop.f32.mrb[0].mxu0
        %v358 = vpop.f32.mrb[0].mxu0
        %v359 = vadd.f32 %v248, %v358
        %v360 = vpop.f32.mrb[0].mxu0
        %361 = vmatprep.mubr.bf16.mxu0 0
        %362 = vmatmul.mubr.bf16.gmra.mrb[0].mxu0 %v267
        %v363 = vpop.f32.mrb[0].mxu0
        %v364 = vadd.f32 %v248, %v363
        %v365 = vpop.f32.mrb[0].mxu0
        %v366 = vpop.f32.mrb[0].mxu0
        %v367 = vadd.f32 %v248, %v366
        %v368 = vpop.f32.mrb[0].mxu0
        %369 = vmatprep.mubr.bf16.mxu0 0
        %370 = vmatmul.mubr.bf16.gmra.mrb[0].mxu0 %v270
        %v371 = vpop.f32.mrb[0].mxu0
        %v372 = vadd.f32 %v248, %v371
        %v373 = vpop.f32.mrb[0].mxu0
        %v374 = vpop.f32.mrb[0].mxu0
        %v375 = vadd.f32 %v248, %v374
        %v376 = vpop.f32.mrb[0].mxu0
        %377 = vmatprep.mubr.bf16.mxu0 0
        %378 = vmatmul.mubr.bf16.gmra.mrb[0].mxu0 %v273
        %v379 = vpop.f32.mrb[0].mxu0
        %v380 = vadd.f32 %v248, %v379
        %v381 = vpop.f32.mrb[0].mxu0
        %v382 = vpop.f32.mrb[0].mxu0
        %v383 = vadd.f32 %v248, %v382
        %v384 = vpop.f32.mrb[0].mxu0
        %385 = vmatprep.mubr.bf16.mxu0 0
        %386 = vmatmul.mubr.bf16.gmra.mrb[0].mxu0 %v276
        %v387 = vpop.f32.mrb[0].mxu0
        %v388 = vadd.f32 %v248, %v387
        %v389 = vpop.f32.mrb[0].mxu0
        %v390 = vpop.f32.mrb[0].mxu0
        %v391 = vadd.f32 %v248, %v390
        %v392 = vpop.f32.mrb[0].mxu0
        %393 = vmatprep.mubr.bf16.mxu0 0
        %394 = vmatmul.mubr.bf16.gmra.mrb[0].mxu0 %v279
        %v395 = vpop.f32.mrb[0].mxu0
        %v396 = vadd.f32 %v248, %v395
        %v397 = vpop.f32.mrb[0].mxu0
        %v398 = vpop.f32.mrb[0].mxu0
        %v399 = vadd.f32 %v248, %v398
        %v400 = vpop.f32.mrb[0].mxu0
        %401 = vmatprep.mubr.bf16.mxu0 0
        %402 = vmatmul.mubr.bf16.gmra.mrb[0].mxu0 %v282
        %v403 = vpop.f32.mrb[0].mxu0
        %v404 = vadd.f32 %v248, %v403
        %v405 = vpop.f32.mrb[0].mxu0
        %v406 = vpop.f32.mrb[0].mxu0
        %v407 = vadd.f32 %v248, %v406
        %v408 = vpop.f32.mrb[0].mxu0
        %409 = vmatprep.mubr.bf16.mxu0 0
        %410 = vmatmul.mubr.bf16.gmra.mrb[0].mxu0 %v285
        %v411 = vpop.f32.mrb[0].mxu0
        %v412 = vadd.f32 %v248, %v411
        %v413 = vpop.f32.mrb[0].mxu0
        %v414 = vpop.f32.mrb[0].mxu0
        %v415 = vadd.f32 %v248, %v414
        %v416 = vpop.f32.mrb[0].mxu0
        %417 = vmatprep.mubr.bf16.mxu0 0
        %418 = vmatmul.mubr.bf16.gmra.mrb[0].mxu0 %v288
        %v419 = vpop.f32.mrb[0].mxu0
        %v420 = vadd.f32 %v248, %v419
        %v421 = vpop.f32.mrb[0].mxu0
        %v422 = vpop.f32.mrb[0].mxu0
        %v423 = vadd.f32 %v248, %v422
        %v424 = vpop.f32.mrb[0].mxu0
        %425 = vmatprep.mubr.bf16.mxu0 0
        %426 = vmatmul.mubr.bf16.gmra.mrb[0].mxu0 %v291
        %v427 = vpop.f32.mrb[0].mxu0
        %v428 = vadd.f32 %v248, %v427
        %v429 = vpop.f32.mrb[0].mxu0
        %v430 = vpop.f32.mrb[0].mxu0
        %v431 = vadd.f32 %v248, %v430
        %v432 = vpop.f32.mrb[0].mxu0
        %433 = vmatprep.mubr.bf16.mxu0 0
        %434 = vmatmul.mubr.bf16.gmra.mrb[0].mxu0 %v294
        %v435 = vpop.f32.mrb[0].mxu0
        %v436 = vadd.f32 %v248, %v435
        %v437 = vpop.f32.mrb[0].mxu0
        %v438 = vpop.f32.mrb[0].mxu0
        %v439 = vadd.f32 %v248, %v438
        %v440 = vpop.f32.mrb[0].mxu0
        %441 = vmatprep.mubr.bf16.mxu0 0
        %442 = vmatmul.mubr.bf16.gmra.mrb[0].mxu0 %v297
        %v443 = vpop.f32.mrb[0].mxu0
        %v444 = vadd.f32 %v248, %v443
        %v445 = vpop.f32.mrb[0].mxu0
        %v446 = vpop.f32.mrb[0].mxu0
        %v447 = vadd.f32 %v248, %v446
        %v448 = vpop.f32.mrb[0].mxu0
        %449 = vmatprep.mubr.bf16.mxu0 0
        %450 = vmatmul.mubr.bf16.gmra.mrb[0].mxu0 %v300
        %v451 = vpop.f32.mrb[0].mxu0
        %v452 = vadd.f32 %v248, %v451
        %v453 = vpop.f32.mrb[0].mxu0
        %v454 = vpop.f32.mrb[0].mxu0
        %v455 = vadd.f32 %v248, %v454
        %v456 = vpop.f32.mrb[0].mxu0
        %457 = vmatprep.mubr.bf16.mxu0 0
        %458 = vmatmul.mubr.bf16.gmra.mrb[0].mxu0 %v303
        %v459 = vpop.f32.mrb[0].mxu0
        %v460 = vadd.f32 %v248, %v459
        %v461 = vpop.f32.mrb[0].mxu0
        %v462 = vpop.f32.mrb[0].mxu0
        %v463 = vadd.f32 %v248, %v462
        %v464 = vpop.f32.mrb[0].mxu0
        %465 = vdwg.mxu0
        %v466 = vpack.c.bf16 %v343, %v340
        %v467 = vpack.c.bf16 %v351, %v348
        %v468 = vpack.c.bf16 %v359, %v356
        %v469 = vpack.c.bf16 %v367, %v364
        %v470 = vpack.c.bf16 %v375, %v372
        %v471 = vpack.c.bf16 %v383, %v380
        %v472 = vpack.c.bf16 %v391, %v388
        %v473 = vpack.c.bf16 %v399, %v396
        %v474 = vpack.c.bf16 %v407, %v404
        %v475 = vpack.c.bf16 %v415, %v412
        %v476 = vpack.c.bf16 %v423, %v420
        %v477 = vpack.c.bf16 %v431, %v428
        %v478 = vpack.c.bf16 %v439, %v436
        %v479 = vpack.c.bf16 %v447, %v444
        %v480 = vpack.c.bf16 %v455, %v452
        %v481 = vpack.c.bf16 %v463, %v460
        %v482 = vmax.bf16 %v466, 0
        %v483 = vmax.bf16 %v467, 0
        %v484 = vmax.bf16 %v468, 0
        %v485 = vmax.bf16 %v469, 0
        %v486 = vmax.bf16 %v470, 0
        %v487 = vmax.bf16 %v471, 0
        %v488 = vmax.bf16 %v472, 0
        %v489 = vmax.bf16 %v473, 0
        %v490 = vmax.bf16 %v474, 0
        %v491 = vmax.bf16 %v475, 0
        %v492 = vmax.bf16 %v476, 0
        %v493 = vmax.bf16 %v477, 0
        %v494 = vmax.bf16 %v478, 0
        %v495 = vmax.bf16 %v479, 0
        %v496 = vmax.bf16 %v480, 0
        %v497 = vmax.bf16 %v481, 0
        %s498 = scalar_lea.vmem %s1, 16
        %v499 = vld [vmem:[%s498] sm:$0xf]
        %v500 = vld [vmem:[%s498 + $0x4] sm:$0xf]
        %v501 = vld [vmem:[%s498 + $0x8] sm:$0xf]
        %v502 = vld [vmem:[%s498 + $0xc] sm:$0xf]
        %s503 = scalar_lea.vmem %s2, 1
        %v504 = vld [vmem:[%s503] sm:$0x1]
        %v506 = vlaneseq
        %v507 = vshrl.u32 %v506, 7
        %v508 = vsub.s32 0, %v507
        %v509 = vrot.slane %v504, %v508
        %v515 = vunpack.c.l.b16 %v499
        %v516 = vunpack.c.l.b16 %v500
        %v517 = vunpack.c.l.b16 %v501
        %v518 = vunpack.c.l.b16 %v502
        %v519 = vpack.c.b16 %v516, %v515
        %v520 = vpack.c.b16 %v518, %v517
        %vm523 = vcmask 261120
        %v525 = vsel %vm523, %v482, 0
        %v528 = vsel %vm523, %v483, 0
        %v531 = vsel %vm523, %v484, 0
        %v534 = vsel %vm523, %v485, 0
        %v537 = vsel %vm523, %v486, 0
        %v540 = vsel %vm523, %v487, 0
        %v543 = vsel %vm523, %v488, 0
        %v546 = vsel %vm523, %v489, 0
        %v549 = vsel %vm523, %v490, 0
        %v552 = vsel %vm523, %v491, 0
        %v555 = vsel %vm523, %v492, 0
        %v558 = vsel %vm523, %v493, 0
        %v561 = vsel %vm523, %v494, 0
        %v564 = vsel %vm523, %v495, 0
        %v567 = vsel %vm523, %v496, 0
        %v570 = vsel %vm523, %v497, 0
        %572 = vmatprep.subr.bf16.mxu0 0
        %573 = vmatpush1.bf16.msra.mxu0 %v519
        %574 = vmatprep.subr.bf16.mxu0 0
        %575 = vmatpush1.bf16.msra.mxu0 %v520
        %576 = vmatprep.subr.bf16.mxu0 0
        %577 = vmatpush1.bf16.msra.mxu0 0
        %578 = vmatprep.subr.bf16.mxu0 0
        %579 = vmatpush1.bf16.msra.mxu0 0
        %580 = vmatprep.subr.bf16.mxu0 0
        %581 = vmatpush1.bf16.msra.mxu0 0
        %582 = vmatprep.subr.bf16.mxu0 0
        %583 = vmatpush1.bf16.msra.mxu0 0
        %584 = vmatprep.subr.bf16.mxu0 0
        %585 = vmatpush1.bf16.msra.mxu0 0
        %586 = vmatprep.subr.bf16.mxu0 0
        %587 = vmatpush1.bf16.msra.mxu0 0
        %588 = vmatprep.subr.bf16.mxu0 0
        %589 = vmatpush1.bf16.msra.mxu0 0
        %590 = vmatprep.subr.bf16.mxu0 0
        %591 = vmatpush1.bf16.msra.mxu0 0
        %592 = vmatprep.subr.bf16.mxu0 0
        %593 = vmatpush1.bf16.msra.mxu0 0
        %594 = vmatprep.subr.bf16.mxu0 0
        %595 = vmatpush1.bf16.msra.mxu0 0
        %596 = vmatprep.subr.bf16.mxu0 0
        %597 = vmatpush1.bf16.msra.mxu0 0
        %598 = vmatprep.subr.bf16.mxu0 0
        %599 = vmatpush1.bf16.msra.mxu0 0
        %600 = vmatprep.subr.bf16.mxu0 0
        %601 = vmatpush1.bf16.msra.mxu0 0
        %602 = vmatprep.subr.bf16.mxu0 0
        %603 = vmatpush1.bf16.msra.mxu0 0
        %604 = vmatprep.mubr.bf16.mxu0 0
        %605 = vmatmul.mubr.bf16.gmra.mrb[0].mxu0 %v525
        %v606 = vpop.f32.mrb[0].mxu0
        %v607 = vadd.f32 %v509, %v606
        %v608 = vpop.f32.mrb[0].mxu0
        %v609 = vpop.f32.mrb[0].mxu0
        %v610 = vadd.f32 %v509, %v609
        %v611 = vpop.f32.mrb[0].mxu0
        %612 = vmatprep.mubr.bf16.mxu0 0
        %613 = vmatmul.mubr.bf16.gmra.mrb[0].mxu0 %v528
        %v614 = vpop.f32.mrb[0].mxu0
        %v615 = vadd.f32 %v509, %v614
        %v616 = vpop.f32.mrb[0].mxu0
        %v617 = vpop.f32.mrb[0].mxu0
        %v618 = vadd.f32 %v509, %v617
        %v619 = vpop.f32.mrb[0].mxu0
        %620 = vmatprep.mubr.bf16.mxu0 0
        %621 = vmatmul.mubr.bf16.gmra.mrb[0].mxu0 %v531
        %v622 = vpop.f32.mrb[0].mxu0
        %v623 = vadd.f32 %v509, %v622
        %v624 = vpop.f32.mrb[0].mxu0
        %v625 = vpop.f32.mrb[0].mxu0
        %v626 = vadd.f32 %v509, %v625
        %v627 = vpop.f32.mrb[0].mxu0
        %628 = vmatprep.mubr.bf16.mxu0 0
        %629 = vmatmul.mubr.bf16.gmra.mrb[0].mxu0 %v534
        %v630 = vpop.f32.mrb[0].mxu0
        %v631 = vadd.f32 %v509, %v630
        %v632 = vpop.f32.mrb[0].mxu0
        %v633 = vpop.f32.mrb[0].mxu0
        %v634 = vadd.f32 %v509, %v633
        %v635 = vpop.f32.mrb[0].mxu0
        %636 = vmatprep.mubr.bf16.mxu0 0
        %637 = vmatmul.mubr.bf16.gmra.mrb[0].mxu0 %v537
        %v638 = vpop.f32.mrb[0].mxu0
        %v639 = vadd.f32 %v509, %v638
        %v640 = vpop.f32.mrb[0].mxu0
        %v641 = vpop.f32.mrb[0].mxu0
        %v642 = vadd.f32 %v509, %v641
        %v643 = vpop.f32.mrb[0].mxu0
        %644 = vmatprep.mubr.bf16.mxu0 0
        %645 = vmatmul.mubr.bf16.gmra.mrb[0].mxu0 %v540
        %v646 = vpop.f32.mrb[0].mxu0
        %v647 = vadd.f32 %v509, %v646
        %v648 = vpop.f32.mrb[0].mxu0
        %v649 = vpop.f32.mrb[0].mxu0
        %v650 = vadd.f32 %v509, %v649
        %v651 = vpop.f32.mrb[0].mxu0
        %652 = vmatprep.mubr.bf16.mxu0 0
        %653 = vmatmul.mubr.bf16.gmra.mrb[0].mxu0 %v543
        %v654 = vpop.f32.mrb[0].mxu0
        %v655 = vadd.f32 %v509, %v654
        %v656 = vpop.f32.mrb[0].mxu0
        %v657 = vpop.f32.mrb[0].mxu0
        %v658 = vadd.f32 %v509, %v657
        %v659 = vpop.f32.mrb[0].mxu0
        %660 = vmatprep.mubr.bf16.mxu0 0
        %661 = vmatmul.mubr.bf16.gmra.mrb[0].mxu0 %v546
        %v662 = vpop.f32.mrb[0].mxu0
        %v663 = vadd.f32 %v509, %v662
        %v664 = vpop.f32.mrb[0].mxu0
        %v665 = vpop.f32.mrb[0].mxu0
        %v666 = vadd.f32 %v509, %v665
        %v667 = vpop.f32.mrb[0].mxu0
        %668 = vmatprep.mubr.bf16.mxu0 0
        %669 = vmatmul.mubr.bf16.gmra.mrb[0].mxu0 %v549
        %v670 = vpop.f32.mrb[0].mxu0
        %v671 = vadd.f32 %v509, %v670
        %v672 = vpop.f32.mrb[0].mxu0
        %v673 = vpop.f32.mrb[0].mxu0
        %v674 = vadd.f32 %v509, %v673
        %v675 = vpop.f32.mrb[0].mxu0
        %676 = vmatprep.mubr.bf16.mxu0 0
        %677 = vmatmul.mubr.bf16.gmra.mrb[0].mxu0 %v552
        %v678 = vpop.f32.mrb[0].mxu0
        %v679 = vadd.f32 %v509, %v678
        %v680 = vpop.f32.mrb[0].mxu0
        %v681 = vpop.f32.mrb[0].mxu0
        %v682 = vadd.f32 %v509, %v681
        %v683 = vpop.f32.mrb[0].mxu0
        %684 = vmatprep.mubr.bf16.mxu0 0
        %685 = vmatmul.mubr.bf16.gmra.mrb[0].mxu0 %v555
        %v686 = vpop.f32.mrb[0].mxu0
        %v687 = vadd.f32 %v509, %v686
        %v688 = vpop.f32.mrb[0].mxu0
        %v689 = vpop.f32.mrb[0].mxu0
        %v690 = vadd.f32 %v509, %v689
        %v691 = vpop.f32.mrb[0].mxu0
        %692 = vmatprep.mubr.bf16.mxu0 0
        %693 = vmatmul.mubr.bf16.gmra.mrb[0].mxu0 %v558
        %v694 = vpop.f32.mrb[0].mxu0
        %v695 = vadd.f32 %v509, %v694
        %v696 = vpop.f32.mrb[0].mxu0
        %v697 = vpop.f32.mrb[0].mxu0
        %v698 = vadd.f32 %v509, %v697
        %v699 = vpop.f32.mrb[0].mxu0
        %700 = vmatprep.mubr.bf16.mxu0 0
        %701 = vmatmul.mubr.bf16.gmra.mrb[0].mxu0 %v561
        %v702 = vpop.f32.mrb[0].mxu0
        %v703 = vadd.f32 %v509, %v702
        %v704 = vpop.f32.mrb[0].mxu0
        %v705 = vpop.f32.mrb[0].mxu0
        %v706 = vadd.f32 %v509, %v705
        %v707 = vpop.f32.mrb[0].mxu0
        %708 = vmatprep.mubr.bf16.mxu0 0
        %709 = vmatmul.mubr.bf16.gmra.mrb[0].mxu0 %v564
        %v710 = vpop.f32.mrb[0].mxu0
        %v711 = vadd.f32 %v509, %v710
        %v712 = vpop.f32.mrb[0].mxu0
        %v713 = vpop.f32.mrb[0].mxu0
        %v714 = vadd.f32 %v509, %v713
        %v715 = vpop.f32.mrb[0].mxu0
        %716 = vmatprep.mubr.bf16.mxu0 0
        %717 = vmatmul.mubr.bf16.gmra.mrb[0].mxu0 %v567
        %v718 = vpop.f32.mrb[0].mxu0
        %v719 = vadd.f32 %v509, %v718
        %v720 = vpop.f32.mrb[0].mxu0
        %v721 = vpop.f32.mrb[0].mxu0
        %v722 = vadd.f32 %v509, %v721
        %v723 = vpop.f32.mrb[0].mxu0
        %724 = vmatprep.mubr.bf16.mxu0 0
        %725 = vmatmul.mubr.bf16.gmra.mrb[0].mxu0 %v570
        %v726 = vpop.f32.mrb[0].mxu0
        %v727 = vadd.f32 %v509, %v726
        %v728 = vpop.f32.mrb[0].mxu0
        %v729 = vpop.f32.mrb[0].mxu0
        %v730 = vadd.f32 %v509, %v729
        %v731 = vpop.f32.mrb[0].mxu0
        %732 = vdwg.mxu0
        %v733 = vpack.c.bf16 %v610, %v607
        %v734 = vpack.c.bf16 %v618, %v615
        %v735 = vpack.c.bf16 %v626, %v623
        %v736 = vpack.c.bf16 %v634, %v631
        %v737 = vpack.c.bf16 %v642, %v639
        %v738 = vpack.c.bf16 %v650, %v647
        %v739 = vpack.c.bf16 %v658, %v655
        %v740 = vpack.c.bf16 %v666, %v663
        %v741 = vpack.c.bf16 %v674, %v671
        %v742 = vpack.c.bf16 %v682, %v679
        %v743 = vpack.c.bf16 %v690, %v687
        %v744 = vpack.c.bf16 %v698, %v695
        %v745 = vpack.c.bf16 %v706, %v703
        %v746 = vpack.c.bf16 %v714, %v711
        %v747 = vpack.c.bf16 %v722, %v719
        %v748 = vpack.c.bf16 %v730, %v727
        %v749 = vmax.bf16 %v733, 0
        %v750 = vmax.bf16 %v734, 0
        %v751 = vmax.bf16 %v735, 0
        %v752 = vmax.bf16 %v736, 0
        %v753 = vmax.bf16 %v737, 0
        %v754 = vmax.bf16 %v738, 0
        %v755 = vmax.bf16 %v739, 0
        %v756 = vmax.bf16 %v740, 0
        %v757 = vmax.bf16 %v741, 0
        %v758 = vmax.bf16 %v742, 0
        %v759 = vmax.bf16 %v743, 0
        %v760 = vmax.bf16 %v744, 0
        %v761 = vmax.bf16 %v745, 0
        %v762 = vmax.bf16 %v746, 0
        %v763 = vmax.bf16 %v747, 0
        %v764 = vmax.bf16 %v748, 0
        %s765 = scalar_lea.vmem %s1, 32
        %v766 = vld [vmem:[%s765] sm:$0xf]
        %v767 = vld [vmem:[%s765 + $0x4] sm:$0xf]
        %v768 = vld [vmem:[%s765 + $0x8] sm:$0xf]
        %v769 = vld [vmem:[%s765 + $0xc] sm:$0xf]
        %s770 = scalar_lea.vmem %s2, 2
        %v771 = vld [vmem:[%s770] sm:$0x1]
        %v773 = vlaneseq
        %v774 = vshrl.u32 %v773, 7
        %v775 = vsub.s32 0, %v774
        %v776 = vrot.slane %v771, %v775
        %v782 = vunpack.c.l.b16 %v766
        %v783 = vunpack.c.l.b16 %v767
        %v784 = vunpack.c.l.b16 %v768
        %v785 = vunpack.c.l.b16 %v769
        %v786 = vpack.c.b16 %v783, %v782
        %v787 = vpack.c.b16 %v785, %v784
        %v791 = vsel %vm523, %v749, 0
        %v794 = vsel %vm523, %v750, 0
        %v797 = vsel %vm523, %v751, 0
        %v800 = vsel %vm523, %v752, 0
        %v803 = vsel %vm523, %v753, 0
        %v806 = vsel %vm523, %v754, 0
        %v809 = vsel %vm523, %v755, 0
        %v812 = vsel %vm523, %v756, 0
        %v815 = vsel %vm523, %v757, 0
        %v818 = vsel %vm523, %v758, 0
        %v821 = vsel %vm523, %v759, 0
        %v824 = vsel %vm523, %v760, 0
        %v827 = vsel %vm523, %v761, 0
        %v830 = vsel %vm523, %v762, 0
        %v833 = vsel %vm523, %v763, 0
        %v836 = vsel %vm523, %v764, 0
        %838 = vmatprep.subr.bf16.mxu0 0
        %839 = vmatpush1.bf16.msra.mxu0 %v786
        %840 = vmatprep.subr.bf16.mxu0 0
        %841 = vmatpush1.bf16.msra.mxu0 %v787
        %842 = vmatprep.subr.bf16.mxu0 0
        %843 = vmatpush1.bf16.msra.mxu0 0
        %844 = vmatprep.subr.bf16.mxu0 0
        %845 = vmatpush1.bf16.msra.mxu0 0
        %846 = vmatprep.subr.bf16.mxu0 0
        %847 = vmatpush1.bf16.msra.mxu0 0
        %848 = vmatprep.subr.bf16.mxu0 0
        %849 = vmatpush1.bf16.msra.mxu0 0
        %850 = vmatprep.subr.bf16.mxu0 0
        %851 = vmatpush1.bf16.msra.mxu0 0
        %852 = vmatprep.subr.bf16.mxu0 0
        %853 = vmatpush1.bf16.msra.mxu0 0
        %854 = vmatprep.subr.bf16.mxu0 0
        %855 = vmatpush1.bf16.msra.mxu0 0
        %856 = vmatprep.subr.bf16.mxu0 0
        %857 = vmatpush1.bf16.msra.mxu0 0
        %858 = vmatprep.subr.bf16.mxu0 0
        %859 = vmatpush1.bf16.msra.mxu0 0
        %860 = vmatprep.subr.bf16.mxu0 0
        %861 = vmatpush1.bf16.msra.mxu0 0
        %862 = vmatprep.subr.bf16.mxu0 0
        %863 = vmatpush1.bf16.msra.mxu0 0
        %864 = vmatprep.subr.bf16.mxu0 0
        %865 = vmatpush1.bf16.msra.mxu0 0
        %866 = vmatprep.subr.bf16.mxu0 0
        %867 = vmatpush1.bf16.msra.mxu0 0
        %868 = vmatprep.subr.bf16.mxu0 0
        %869 = vmatpush1.bf16.msra.mxu0 0
        %870 = vmatprep.mubr.bf16.mxu0 0
        %871 = vmatmul.mubr.bf16.gmra.mrb[0].mxu0 %v791
        %v872 = vpop.f32.mrb[0].mxu0
        %v873 = vadd.f32 %v776, %v872
        %v874 = vpop.f32.mrb[0].mxu0
        %v875 = vpop.f32.mrb[0].mxu0
        %v876 = vadd.f32 %v776, %v875
        %v877 = vpop.f32.mrb[0].mxu0
        %878 = vmatprep.mubr.bf16.mxu0 0
        %879 = vmatmul.mubr.bf16.gmra.mrb[0].mxu0 %v794
        %v880 = vpop.f32.mrb[0].mxu0
        %v881 = vadd.f32 %v776, %v880
        %v882 = vpop.f32.mrb[0].mxu0
        %v883 = vpop.f32.mrb[0].mxu0
        %v884 = vadd.f32 %v776, %v883
        %v885 = vpop.f32.mrb[0].mxu0
        %886 = vmatprep.mubr.bf16.mxu0 0
        %887 = vmatmul.mubr.bf16.gmra.mrb[0].mxu0 %v797
        %v888 = vpop.f32.mrb[0].mxu0
        %v889 = vadd.f32 %v776, %v888
        %v890 = vpop.f32.mrb[0].mxu0
        %v891 = vpop.f32.mrb[0].mxu0
        %v892 = vadd.f32 %v776, %v891
        %v893 = vpop.f32.mrb[0].mxu0
        %894 = vmatprep.mubr.bf16.mxu0 0
        %895 = vmatmul.mubr.bf16.gmra.mrb[0].mxu0 %v800
        %v896 = vpop.f32.mrb[0].mxu0
        %v897 = vadd.f32 %v776, %v896
        %v898 = vpop.f32.mrb[0].mxu0
        %v899 = vpop.f32.mrb[0].mxu0
        %v900 = vadd.f32 %v776, %v899
        %v901 = vpop.f32.mrb[0].mxu0
        %902 = vmatprep.mubr.bf16.mxu0 0
        %903 = vmatmul.mubr.bf16.gmra.mrb[0].mxu0 %v803
        %v904 = vpop.f32.mrb[0].mxu0
        %v905 = vadd.f32 %v776, %v904
        %v906 = vpop.f32.mrb[0].mxu0
        %v907 = vpop.f32.mrb[0].mxu0
        %v908 = vadd.f32 %v776, %v907
        %v909 = vpop.f32.mrb[0].mxu0
        %910 = vmatprep.mubr.bf16.mxu0 0
        %911 = vmatmul.mubr.bf16.gmra.mrb[0].mxu0 %v806
        %v912 = vpop.f32.mrb[0].mxu0
        %v913 = vadd.f32 %v776, %v912
        %v914 = vpop.f32.mrb[0].mxu0
        %v915 = vpop.f32.mrb[0].mxu0
        %v916 = vadd.f32 %v776, %v915
        %v917 = vpop.f32.mrb[0].mxu0
        %918 = vmatprep.mubr.bf16.mxu0 0
        %919 = vmatmul.mubr.bf16.gmra.mrb[0].mxu0 %v809
        %v920 = vpop.f32.mrb[0].mxu0
        %v921 = vadd.f32 %v776, %v920
        %v922 = vpop.f32.mrb[0].mxu0
        %v923 = vpop.f32.mrb[0].mxu0
        %v924 = vadd.f32 %v776, %v923
        %v925 = vpop.f32.mrb[0].mxu0
        %926 = vmatprep.mubr.bf16.mxu0 0
        %927 = vmatmul.mubr.bf16.gmra.mrb[0].mxu0 %v812
        %v928 = vpop.f32.mrb[0].mxu0
        %v929 = vadd.f32 %v776, %v928
        %v930 = vpop.f32.mrb[0].mxu0
        %v931 = vpop.f32.mrb[0].mxu0
        %v932 = vadd.f32 %v776, %v931
        %v933 = vpop.f32.mrb[0].mxu0
        %934 = vmatprep.mubr.bf16.mxu0 0
        %935 = vmatmul.mubr.bf16.gmra.mrb[0].mxu0 %v815
        %v936 = vpop.f32.mrb[0].mxu0
        %v937 = vadd.f32 %v776, %v936
        %v938 = vpop.f32.mrb[0].mxu0
        %v939 = vpop.f32.mrb[0].mxu0
        %v940 = vadd.f32 %v776, %v939
        %v941 = vpop.f32.mrb[0].mxu0
        %942 = vmatprep.mubr.bf16.mxu0 0
        %943 = vmatmul.mubr.bf16.gmra.mrb[0].mxu0 %v818
        %v944 = vpop.f32.mrb[0].mxu0
        %v945 = vadd.f32 %v776, %v944
        %v946 = vpop.f32.mrb[0].mxu0
        %v947 = vpop.f32.mrb[0].mxu0
        %v948 = vadd.f32 %v776, %v947
        %v949 = vpop.f32.mrb[0].mxu0
        %950 = vmatprep.mubr.bf16.mxu0 0
        %951 = vmatmul.mubr.bf16.gmra.mrb[0].mxu0 %v821
        %v952 = vpop.f32.mrb[0].mxu0
        %v953 = vadd.f32 %v776, %v952
        %v954 = vpop.f32.mrb[0].mxu0
        %v955 = vpop.f32.mrb[0].mxu0
        %v956 = vadd.f32 %v776, %v955
        %v957 = vpop.f32.mrb[0].mxu0
        %958 = vmatprep.mubr.bf16.mxu0 0
        %959 = vmatmul.mubr.bf16.gmra.mrb[0].mxu0 %v824
        %v960 = vpop.f32.mrb[0].mxu0
        %v961 = vadd.f32 %v776, %v960
        %v962 = vpop.f32.mrb[0].mxu0
        %v963 = vpop.f32.mrb[0].mxu0
        %v964 = vadd.f32 %v776, %v963
        %v965 = vpop.f32.mrb[0].mxu0
        %966 = vmatprep.mubr.bf16.mxu0 0
        %967 = vmatmul.mubr.bf16.gmra.mrb[0].mxu0 %v827
        %v968 = vpop.f32.mrb[0].mxu0
        %v969 = vadd.f32 %v776, %v968
        %v970 = vpop.f32.mrb[0].mxu0
        %v971 = vpop.f32.mrb[0].mxu0
        %v972 = vadd.f32 %v776, %v971
        %v973 = vpop.f32.mrb[0].mxu0
        %974 = vmatprep.mubr.bf16.mxu0 0
        %975 = vmatmul.mubr.bf16.gmra.mrb[0].mxu0 %v830
        %v976 = vpop.f32.mrb[0].mxu0
        %v977 = vadd.f32 %v776, %v976
        %v978 = vpop.f32.mrb[0].mxu0
        %v979 = vpop.f32.mrb[0].mxu0
        %v980 = vadd.f32 %v776, %v979
        %v981 = vpop.f32.mrb[0].mxu0
        %982 = vmatprep.mubr.bf16.mxu0 0
        %983 = vmatmul.mubr.bf16.gmra.mrb[0].mxu0 %v833
        %v984 = vpop.f32.mrb[0].mxu0
        %v985 = vadd.f32 %v776, %v984
        %v986 = vpop.f32.mrb[0].mxu0
        %v987 = vpop.f32.mrb[0].mxu0
        %v988 = vadd.f32 %v776, %v987
        %v989 = vpop.f32.mrb[0].mxu0
        %990 = vmatprep.mubr.bf16.mxu0 0
        %991 = vmatmul.mubr.bf16.gmra.mrb[0].mxu0 %v836
        %v992 = vpop.f32.mrb[0].mxu0
        %v993 = vadd.f32 %v776, %v992
        %v994 = vpop.f32.mrb[0].mxu0
        %v995 = vpop.f32.mrb[0].mxu0
        %v996 = vadd.f32 %v776, %v995
        %v997 = vpop.f32.mrb[0].mxu0
        %998 = vdwg.mxu0
        %v999 = vpack.c.bf16 %v876, %v873
        %v1000 = vpack.c.bf16 %v884, %v881
        %v1001 = vpack.c.bf16 %v892, %v889
        %v1002 = vpack.c.bf16 %v900, %v897
        %v1003 = vpack.c.bf16 %v908, %v905
        %v1004 = vpack.c.bf16 %v916, %v913
        %v1005 = vpack.c.bf16 %v924, %v921
        %v1006 = vpack.c.bf16 %v932, %v929
        %v1007 = vpack.c.bf16 %v940, %v937
        %v1008 = vpack.c.bf16 %v948, %v945
        %v1009 = vpack.c.bf16 %v956, %v953
        %v1010 = vpack.c.bf16 %v964, %v961
        %v1011 = vpack.c.bf16 %v972, %v969
        %v1012 = vpack.c.bf16 %v980, %v977
        %v1013 = vpack.c.bf16 %v988, %v985
        %v1014 = vpack.c.bf16 %v996, %v993
        %v1015 = vmax.bf16 %v999, 0
        %v1016 = vmax.bf16 %v1000, 0
        %v1017 = vmax.bf16 %v1001, 0
        %v1018 = vmax.bf16 %v1002, 0
        %v1019 = vmax.bf16 %v1003, 0
        %v1020 = vmax.bf16 %v1004, 0
        %v1021 = vmax.bf16 %v1005, 0
        %v1022 = vmax.bf16 %v1006, 0
        %v1023 = vmax.bf16 %v1007, 0
        %v1024 = vmax.bf16 %v1008, 0
        %v1025 = vmax.bf16 %v1009, 0
        %v1026 = vmax.bf16 %v1010, 0
        %v1027 = vmax.bf16 %v1011, 0
        %v1028 = vmax.bf16 %v1012, 0
        %v1029 = vmax.bf16 %v1013, 0
        %v1030 = vmax.bf16 %v1014, 0
        %s1031 = scalar_lea.vmem %s1, 48
        %v1032 = vld [vmem:[%s1031] sm:$0xf]
        %v1033 = vld [vmem:[%s1031 + $0x4] sm:$0xf]
        %v1034 = vld [vmem:[%s1031 + $0x8] sm:$0xf]
        %v1035 = vld [vmem:[%s1031 + $0xc] sm:$0xf]
        %s1036 = scalar_lea.vmem %s2, 3
        %v1037 = vld [vmem:[%s1036] sm:$0x1]
        %v1039 = vlaneseq
        %v1040 = vshrl.u32 %v1039, 7
        %v1041 = vsub.s32 0, %v1040
        %v1042 = vrot.slane %v1037, %v1041
        %v1048 = vunpack.c.l.b16 %v1032
        %v1049 = vunpack.c.l.b16 %v1033
        %v1050 = vunpack.c.l.b16 %v1034
        %v1051 = vunpack.c.l.b16 %v1035
        %v1052 = vpack.c.b16 %v1049, %v1048
        %v1053 = vpack.c.b16 %v1051, %v1050
        %v1057 = vsel %vm523, %v1015, 0
        %v1060 = vsel %vm523, %v1016, 0
        %v1063 = vsel %vm523, %v1017, 0
        %v1066 = vsel %vm523, %v1018, 0
        %v1069 = vsel %vm523, %v1019, 0
        %v1072 = vsel %vm523, %v1020, 0
        %v1075 = vsel %vm523, %v1021, 0
        %v1078 = vsel %vm523, %v1022, 0
        %v1081 = vsel %vm523, %v1023, 0
        %v1084 = vsel %vm523, %v1024, 0
        %v1087 = vsel %vm523, %v1025, 0
        %v1090 = vsel %vm523, %v1026, 0
        %v1093 = vsel %vm523, %v1027, 0
        %v1096 = vsel %vm523, %v1028, 0
        %v1099 = vsel %vm523, %v1029, 0
        %v1102 = vsel %vm523, %v1030, 0
        %1104 = vmatprep.subr.bf16.mxu0 0
        %1105 = vmatpush1.bf16.msra.mxu0 %v1052
        %1106 = vmatprep.subr.bf16.mxu0 0
        %1107 = vmatpush1.bf16.msra.mxu0 %v1053
        %1108 = vmatprep.subr.bf16.mxu0 0
        %1109 = vmatpush1.bf16.msra.mxu0 0
        %1110 = vmatprep.subr.bf16.mxu0 0
        %1111 = vmatpush1.bf16.msra.mxu0 0
        %1112 = vmatprep.subr.bf16.mxu0 0
        %1113 = vmatpush1.bf16.msra.mxu0 0
        %1114 = vmatprep.subr.bf16.mxu0 0
        %1115 = vmatpush1.bf16.msra.mxu0 0
        %1116 = vmatprep.subr.bf16.mxu0 0
        %1117 = vmatpush1.bf16.msra.mxu0 0
        %1118 = vmatprep.subr.bf16.mxu0 0
        %1119 = vmatpush1.bf16.msra.mxu0 0
        %1120 = vmatprep.subr.bf16.mxu0 0
        %1121 = vmatpush1.bf16.msra.mxu0 0
        %1122 = vmatprep.subr.bf16.mxu0 0
        %1123 = vmatpush1.bf16.msra.mxu0 0
        %1124 = vmatprep.subr.bf16.mxu0 0
        %1125 = vmatpush1.bf16.msra.mxu0 0
        %1126 = vmatprep.subr.bf16.mxu0 0
        %1127 = vmatpush1.bf16.msra.mxu0 0
        %1128 = vmatprep.subr.bf16.mxu0 0
        %1129 = vmatpush1.bf16.msra.mxu0 0
        %1130 = vmatprep.subr.bf16.mxu0 0
        %1131 = vmatpush1.bf16.msra.mxu0 0
        %1132 = vmatprep.subr.bf16.mxu0 0
        %1133 = vmatpush1.bf16.msra.mxu0 0
        %1134 = vmatprep.subr.bf16.mxu0 0
        %1135 = vmatpush1.bf16.msra.mxu0 0
        %1136 = vmatprep.mubr.bf16.mxu0 0
        %1137 = vmatmul.mubr.bf16.gmra.mrb[0].mxu0 %v1057
        %v1138 = vpop.f32.mrb[0].mxu0
        %v1139 = vadd.f32 %v1042, %v1138
        %v1140 = vpop.f32.mrb[0].mxu0
        %v1141 = vpop.f32.mrb[0].mxu0
        %v1142 = vadd.f32 %v1042, %v1141
        %v1143 = vpop.f32.mrb[0].mxu0
        %1144 = vmatprep.mubr.bf16.mxu0 0
        %1145 = vmatmul.mubr.bf16.gmra.mrb[0].mxu0 %v1060
        %v1146 = vpop.f32.mrb[0].mxu0
        %v1147 = vadd.f32 %v1042, %v1146
        %v1148 = vpop.f32.mrb[0].mxu0
        %v1149 = vpop.f32.mrb[0].mxu0
        %v1150 = vadd.f32 %v1042, %v1149
        %v1151 = vpop.f32.mrb[0].mxu0
        %1152 = vmatprep.mubr.bf16.mxu0 0
        %1153 = vmatmul.mubr.bf16.gmra.mrb[0].mxu0 %v1063
        %v1154 = vpop.f32.mrb[0].mxu0
        %v1155 = vadd.f32 %v1042, %v1154
        %v1156 = vpop.f32.mrb[0].mxu0
        %v1157 = vpop.f32.mrb[0].mxu0
        %v1158 = vadd.f32 %v1042, %v1157
        %v1159 = vpop.f32.mrb[0].mxu0
        %1160 = vmatprep.mubr.bf16.mxu0 0
        %1161 = vmatmul.mubr.bf16.gmra.mrb[0].mxu0 %v1066
        %v1162 = vpop.f32.mrb[0].mxu0
        %v1163 = vadd.f32 %v1042, %v1162
        %v1164 = vpop.f32.mrb[0].mxu0
        %v1165 = vpop.f32.mrb[0].mxu0
        %v1166 = vadd.f32 %v1042, %v1165
        %v1167 = vpop.f32.mrb[0].mxu0
        %1168 = vmatprep.mubr.bf16.mxu0 0
        %1169 = vmatmul.mubr.bf16.gmra.mrb[0].mxu0 %v1069
        %v1170 = vpop.f32.mrb[0].mxu0
        %v1171 = vadd.f32 %v1042, %v1170
        %v1172 = vpop.f32.mrb[0].mxu0
        %v1173 = vpop.f32.mrb[0].mxu0
        %v1174 = vadd.f32 %v1042, %v1173
        %v1175 = vpop.f32.mrb[0].mxu0
        %1176 = vmatprep.mubr.bf16.mxu0 0
        %1177 = vmatmul.mubr.bf16.gmra.mrb[0].mxu0 %v1072
        %v1178 = vpop.f32.mrb[0].mxu0
        %v1179 = vadd.f32 %v1042, %v1178
        %v1180 = vpop.f32.mrb[0].mxu0
        %v1181 = vpop.f32.mrb[0].mxu0
        %v1182 = vadd.f32 %v1042, %v1181
        %v1183 = vpop.f32.mrb[0].mxu0
        %1184 = vmatprep.mubr.bf16.mxu0 0
        %1185 = vmatmul.mubr.bf16.gmra.mrb[0].mxu0 %v1075
        %v1186 = vpop.f32.mrb[0].mxu0
        %v1187 = vadd.f32 %v1042, %v1186
        %v1188 = vpop.f32.mrb[0].mxu0
        %v1189 = vpop.f32.mrb[0].mxu0
        %v1190 = vadd.f32 %v1042, %v1189
        %v1191 = vpop.f32.mrb[0].mxu0
        %1192 = vmatprep.mubr.bf16.mxu0 0
        %1193 = vmatmul.mubr.bf16.gmra.mrb[0].mxu0 %v1078
        %v1194 = vpop.f32.mrb[0].mxu0
        %v1195 = vadd.f32 %v1042, %v1194
        %v1196 = vpop.f32.mrb[0].mxu0
        %v1197 = vpop.f32.mrb[0].mxu0
        %v1198 = vadd.f32 %v1042, %v1197
        %v1199 = vpop.f32.mrb[0].mxu0
        %1200 = vmatprep.mubr.bf16.mxu0 0
        %1201 = vmatmul.mubr.bf16.gmra.mrb[0].mxu0 %v1081
        %v1202 = vpop.f32.mrb[0].mxu0
        %v1203 = vadd.f32 %v1042, %v1202
        %v1204 = vpop.f32.mrb[0].mxu0
        %v1205 = vpop.f32.mrb[0].mxu0
        %v1206 = vadd.f32 %v1042, %v1205
        %v1207 = vpop.f32.mrb[0].mxu0
        %1208 = vmatprep.mubr.bf16.mxu0 0
        %1209 = vmatmul.mubr.bf16.gmra.mrb[0].mxu0 %v1084
        %v1210 = vpop.f32.mrb[0].mxu0
        %v1211 = vadd.f32 %v1042, %v1210
        %v1212 = vpop.f32.mrb[0].mxu0
        %v1213 = vpop.f32.mrb[0].mxu0
        %v1214 = vadd.f32 %v1042, %v1213
        %v1215 = vpop.f32.mrb[0].mxu0
        %1216 = vmatprep.mubr.bf16.mxu0 0
        %1217 = vmatmul.mubr.bf16.gmra.mrb[0].mxu0 %v1087
        %v1218 = vpop.f32.mrb[0].mxu0
        %v1219 = vadd.f32 %v1042, %v1218
        %v1220 = vpop.f32.mrb[0].mxu0
        %v1221 = vpop.f32.mrb[0].mxu0
        %v1222 = vadd.f32 %v1042, %v1221
        %v1223 = vpop.f32.mrb[0].mxu0
        %1224 = vmatprep.mubr.bf16.mxu0 0
        %1225 = vmatmul.mubr.bf16.gmra.mrb[0].mxu0 %v1090
        %v1226 = vpop.f32.mrb[0].mxu0
        %v1227 = vadd.f32 %v1042, %v1226
        %v1228 = vpop.f32.mrb[0].mxu0
        %v1229 = vpop.f32.mrb[0].mxu0
        %v1230 = vadd.f32 %v1042, %v1229
        %v1231 = vpop.f32.mrb[0].mxu0
        %1232 = vmatprep.mubr.bf16.mxu0 0
        %1233 = vmatmul.mubr.bf16.gmra.mrb[0].mxu0 %v1093
        %v1234 = vpop.f32.mrb[0].mxu0
        %v1235 = vadd.f32 %v1042, %v1234
        %v1236 = vpop.f32.mrb[0].mxu0
        %v1237 = vpop.f32.mrb[0].mxu0
        %v1238 = vadd.f32 %v1042, %v1237
        %v1239 = vpop.f32.mrb[0].mxu0
        %1240 = vmatprep.mubr.bf16.mxu0 0
        %1241 = vmatmul.mubr.bf16.gmra.mrb[0].mxu0 %v1096
        %v1242 = vpop.f32.mrb[0].mxu0
        %v1243 = vadd.f32 %v1042, %v1242
        %v1244 = vpop.f32.mrb[0].mxu0
        %v1245 = vpop.f32.mrb[0].mxu0
        %v1246 = vadd.f32 %v1042, %v1245
        %v1247 = vpop.f32.mrb[0].mxu0
        %1248 = vmatprep.mubr.bf16.mxu0 0
        %1249 = vmatmul.mubr.bf16.gmra.mrb[0].mxu0 %v1099
        %v1250 = vpop.f32.mrb[0].mxu0
        %v1251 = vadd.f32 %v1042, %v1250
        %v1252 = vpop.f32.mrb[0].mxu0
        %v1253 = vpop.f32.mrb[0].mxu0
        %v1254 = vadd.f32 %v1042, %v1253
        %v1255 = vpop.f32.mrb[0].mxu0
        %1256 = vmatprep.mubr.bf16.mxu0 0
        %1257 = vmatmul.mubr.bf16.gmra.mrb[0].mxu0 %v1102
        %v1258 = vpop.f32.mrb[0].mxu0
        %v1259 = vadd.f32 %v1042, %v1258
        %v1260 = vpop.f32.mrb[0].mxu0
        %v1261 = vpop.f32.mrb[0].mxu0
        %v1262 = vadd.f32 %v1042, %v1261
        %v1263 = vpop.f32.mrb[0].mxu0
        %1264 = vdwg.mxu0
        %vm1265 = vcmask 31744
        %1266 = vst.msk [vmem:[%s172] sm:$0xff] %vm1265, %v1139
        %1267 = vst.msk [vmem:[%s172 + $0x8] sm:$0xff] %vm1265, %v1142
        %1268 = vst.msk [vmem:[%s172 + $0x10] sm:$0xff] %vm1265, %v1147
        %1269 = vst.msk [vmem:[%s172 + $0x18] sm:$0xff] %vm1265, %v1150
        %1270 = vst.msk [vmem:[%s172 + $0x20] sm:$0xff] %vm1265, %v1155
        %1271 = vst.msk [vmem:[%s172 + $0x28] sm:$0xff] %vm1265, %v1158
        %1272 = vst.msk [vmem:[%s172 + $0x30] sm:$0xff] %vm1265, %v1163
        %1273 = vst.msk [vmem:[%s172 + $0x38] sm:$0xff] %vm1265, %v1166
        %1274 = vst.msk [vmem:[%s172 + $0x40] sm:$0xff] %vm1265, %v1171
        %1275 = vst.msk [vmem:[%s172 + $0x48] sm:$0xff] %vm1265, %v1174
        %1276 = vst.msk [vmem:[%s172 + $0x50] sm:$0xff] %vm1265, %v1179
        %1277 = vst.msk [vmem:[%s172 + $0x58] sm:$0xff] %vm1265, %v1182
        %1278 = vst.msk [vmem:[%s172 + $0x60] sm:$0xff] %vm1265, %v1187
        %1279 = vst.msk [vmem:[%s172 + $0x68] sm:$0xff] %vm1265, %v1190
        %1280 = vst.msk [vmem:[%s172 + $0x70] sm:$0xff] %vm1265, %v1195
        %1281 = vst.msk [vmem:[%s172 + $0x78] sm:$0xff] %vm1265, %v1198
        %1282 = vst.msk [vmem:[%s172 + $0x80] sm:$0xff] %vm1265, %v1203
        %1283 = vst.msk [vmem:[%s172 + $0x88] sm:$0xff] %vm1265, %v1206
        %1284 = vst.msk [vmem:[%s172 + $0x90] sm:$0xff] %vm1265, %v1211
        %1285 = vst.msk [vmem:[%s172 + $0x98] sm:$0xff] %vm1265, %v1214
        %1286 = vst.msk [vmem:[%s172 + $0xa0] sm:$0xff] %vm1265, %v1219
        %1287 = vst.msk [vmem:[%s172 + $0xa8] sm:$0xff] %vm1265, %v1222
        %1288 = vst.msk [vmem:[%s172 + $0xb0] sm:$0xff] %vm1265, %v1227
        %1289 = vst.msk [vmem:[%s172 + $0xb8] sm:$0xff] %vm1265, %v1230
        %1290 = vst.msk [vmem:[%s172 + $0xc0] sm:$0xff] %vm1265, %v1235
        %1291 = vst.msk [vmem:[%s172 + $0xc8] sm:$0xff] %vm1265, %v1238
        %1292 = vst.msk [vmem:[%s172 + $0xd0] sm:$0xff] %vm1265, %v1243
        %1293 = vst.msk [vmem:[%s172 + $0xd8] sm:$0xff] %vm1265, %v1246
        %1294 = vst.msk [vmem:[%s172 + $0xe0] sm:$0xff] %vm1265, %v1251
        %1295 = vst.msk [vmem:[%s172 + $0xe8] sm:$0xff] %vm1265, %v1254
        %1296 = vst.msk [vmem:[%s172 + $0xf0] sm:$0xff] %vm1265, %v1259
        %1297 = vst.msk [vmem:[%s172 + $0xf8] sm:$0xff] %vm1265, %v1262
        %s1298 = sand.u32 %s90, 1
        %s1299 = sand.u32 %s90, 1
        %s1300 = smul.addr %s1299, 256
        %s1301 = scalar_lea.vmem [#allocation2], %s1300
        // Predicated region
        $region33: #{mlp_forward.1} parent=31 // pred_check
          %p1302 = pneg %p100
        $region34: #{mlp_forward.1} parent=31 // pred_check_branch
          %1304 = sbr.rel (%p1302) target = $region36
        $region35: #{mlp_forward.1} parent=31 // pred_region
          %s1305 = smul.u32 32, %s14
          %s1306 = ssub.s32 38, %s1305
          %p1307 = scmp.lt.s32.totalorder %s1306, 32
          %s1308 = scalar_select %p1307, %s1306, 32
          %s1309 = smul.u32 128, %s1308
          %p1310 = scmp.ne.s32.totalorder 0, %s1309
          %s1311 = smul.addr %s1305, 8
          %s1312 = scalar_lea.vmem %s3, %s1311
          // Predicated region
          $region37: #{mlp_forward.1} parent=35 // pred_check
            %p1313 = pneg %p1310
          $region38: #{mlp_forward.1} parent=35 // pred_check_branch
            %1315 = sbr.rel (%p1313) target = $region40
          $region39: #{mlp_forward.1} parent=35 // pred_region
            // Predicated region
            $region41: #{mlp_forward.1} parent=39 // pred_check
              _
            $region42: #{mlp_forward.1} parent=39 // pred_check_branch
              %1317 = sbr.rel (0) target = $region44
            $region43: #{mlp_forward.1} parent=39 // pred_region
              // Predicated region
              $region63: #{mlp_forward.1} parent=43 // pred_check
                _
              $region64: #{mlp_forward.1} parent=43 // pred_check_branch
                %1428 = sbr.rel (0) target = $region66
              $region65: #{mlp_forward.1} parent=43 // pred_region
                %s1429 = sshrl.u32 %s1308, 5
                // While loop
                $region67: #{mlp_forward.1} parent=65 // loop_pre_header
                  _
                $region68: #{mlp_forward.1} parent=65 // loop_header
                  %s1431 = sphi 0, %s1433
                  %p1432 = scmp.ge.s32.totalorder %s1431, %s1429
                  %s1436 = sphi 0, %s1505
                  %s1437 = sphi %s1301, %s1508
                  %s1438 = sphi %s1312, %s1509
                $region69: #{mlp_forward.1} parent=65 // loop_header_branch
                  %1435 = sbr.rel (%p1432) target = $region73
                $region70: #{mlp_forward.1} parent=65 // loop_body
                  %v1439 = vld [vmem:[%s1437] sm:$0xff]
                  %1440 = vst [vmem:[%s1438] sm:$0xff] %v1439
                  %v1441 = vld [vmem:[%s1437 + $0x8] sm:$0xff]
                  %1442 = vst [vmem:[%s1438 + $0x8] sm:$0xff] %v1441
                  %v1443 = vld [vmem:[%s1437 + $0x10] sm:$0xff]
                  %1444 = vst [vmem:[%s1438 + $0x10] sm:$0xff] %v1443
                  %v1445 = vld [vmem:[%s1437 + $0x18] sm:$0xff]
                  %1446 = vst [vmem:[%s1438 + $0x18] sm:$0xff] %v1445
                  %v1447 = vld [vmem:[%s1437 + $0x20] sm:$0xff]
                  %1448 = vst [vmem:[%s1438 + $0x20] sm:$0xff] %v1447
                  %v1449 = vld [vmem:[%s1437 + $0x28] sm:$0xff]
                  %1450 = vst [vmem:[%s1438 + $0x28] sm:$0xff] %v1449
                  %v1451 = vld [vmem:[%s1437 + $0x30] sm:$0xff]
                  %1452 = vst [vmem:[%s1438 + $0x30] sm:$0xff] %v1451
                  %v1453 = vld [vmem:[%s1437 + $0x38] sm:$0xff]
                  %1454 = vst [vmem:[%s1438 + $0x38] sm:$0xff] %v1453
                  %v1455 = vld [vmem:[%s1437 + $0x40] sm:$0xff]
                  %1456 = vst [vmem:[%s1438 + $0x40] sm:$0xff] %v1455
                  %v1457 = vld [vmem:[%s1437 + $0x48] sm:$0xff]
                  %1458 = vst [vmem:[%s1438 + $0x48] sm:$0xff] %v1457
                  %v1459 = vld [vmem:[%s1437 + $0x50] sm:$0xff]
                  %1460 = vst [vmem:[%s1438 + $0x50] sm:$0xff] %v1459
                  %v1461 = vld [vmem:[%s1437 + $0x58] sm:$0xff]
                  %1462 = vst [vmem:[%s1438 + $0x58] sm:$0xff] %v1461
                  %v1463 = vld [vmem:[%s1437 + $0x60] sm:$0xff]
                  %1464 = vst [vmem:[%s1438 + $0x60] sm:$0xff] %v1463
                  %v1465 = vld [vmem:[%s1437 + $0x68] sm:$0xff]
                  %1466 = vst [vmem:[%s1438 + $0x68] sm:$0xff] %v1465
                  %v1467 = vld [vmem:[%s1437 + $0x70] sm:$0xff]
                  %1468 = vst [vmem:[%s1438 + $0x70] sm:$0xff] %v1467
                  %v1469 = vld [vmem:[%s1437 + $0x78] sm:$0xff]
                  %1470 = vst [vmem:[%s1438 + $0x78] sm:$0xff] %v1469
                  %v1471 = vld [vmem:[%s1437 + $0x80] sm:$0xff]
                  %1472 = vst [vmem:[%s1438 + $0x80] sm:$0xff] %v1471
                  %v1473 = vld [vmem:[%s1437 + $0x88] sm:$0xff]
                  %1474 = vst [vmem:[%s1438 + $0x88] sm:$0xff] %v1473
                  %v1475 = vld [vmem:[%s1437 + $0x90] sm:$0xff]
                  %1476 = vst [vmem:[%s1438 + $0x90] sm:$0xff] %v1475
                  %v1477 = vld [vmem:[%s1437 + $0x98] sm:$0xff]
                  %1478 = vst [vmem:[%s1438 + $0x98] sm:$0xff] %v1477
                  %v1479 = vld [vmem:[%s1437 + $0xa0] sm:$0xff]
                  %1480 = vst [vmem:[%s1438 + $0xa0] sm:$0xff] %v1479
                  %v1481 = vld [vmem:[%s1437 + $0xa8] sm:$0xff]
                  %1482 = vst [vmem:[%s1438 + $0xa8] sm:$0xff] %v1481
                  %v1483 = vld [vmem:[%s1437 + $0xb0] sm:$0xff]
                  %1484 = vst [vmem:[%s1438 + $0xb0] sm:$0xff] %v1483
                  %v1485 = vld [vmem:[%s1437 + $0xb8] sm:$0xff]
                  %1486 = vst [vmem:[%s1438 + $0xb8] sm:$0xff] %v1485
                  %v1487 = vld [vmem:[%s1437 + $0xc0] sm:$0xff]
                  %1488 = vst [vmem:[%s1438 + $0xc0] sm:$0xff] %v1487
                  %v1489 = vld [vmem:[%s1437 + $0xc8] sm:$0xff]
                  %1490 = vst [vmem:[%s1438 + $0xc8] sm:$0xff] %v1489
                  %v1491 = vld [vmem:[%s1437 + $0xd0] sm:$0xff]
                  %1492 = vst [vmem:[%s1438 + $0xd0] sm:$0xff] %v1491
                  %v1493 = vld [vmem:[%s1437 + $0xd8] sm:$0xff]
                  %1494 = vst [vmem:[%s1438 + $0xd8] sm:$0xff] %v1493
                  %v1495 = vld [vmem:[%s1437 + $0xe0] sm:$0xff]
                  %1496 = vst [vmem:[%s1438 + $0xe0] sm:$0xff] %v1495
                  %v1497 = vld [vmem:[%s1437 + $0xe8] sm:$0xff]
                  %1498 = vst [vmem:[%s1438 + $0xe8] sm:$0xff] %v1497
                  %v1499 = vld [vmem:[%s1437 + $0xf0] sm:$0xff]
                  %1500 = vst [vmem:[%s1438 + $0xf0] sm:$0xff] %v1499
                  %v1501 = vld [vmem:[%s1437 + $0xf8] sm:$0xff]
                  %1502 = vst [vmem:[%s1438 + $0xf8] sm:$0xff] %v1501
                  %s1503 = sadd.s32 1, %s1436
                  %p1504 = scmp.ge.s32.totalorder %s1503, %s1429
                  %s1505 = scalar_select %p1504, 0, %s1503
                  %s1506 = smul.u32 %s1505, 256
                  %s1507 = smul.u32 %s1505, 256
                  %s1508 = scalar_lea.vmem %s1301, %s1506 [#allocation2]
                  %s1509 = scalar_lea.vmem %s1312, %s1507
                $region71: #{mlp_forward.1} parent=65 // loop_footer
                  %s1433 = sadd.s32 %s1431, 1
                $region72: #{mlp_forward.1} parent=65 // loop_footer_branch
                  %1430 = sbr.rel target = $region68
                $region73: #{mlp_forward.1} parent=65 // loop_exit
                  _
                %s1510 = sshrl.u32 %s1308, 5
                %s1511 = sand.u32 %s1308, 31
                %s1512 = smul.u32 %s1510, 32
                %s1513 = smul.u32 8, %s1512
                %s1514 = scalar_lea.vmem %s1301, %s1513 [#allocation2]
                %s1515 = smul.u32 8, %s1512
                %s1516 = scalar_lea.vmem %s1312, %s1515
                // While loop
                $region74: #{mlp_forward.1} parent=65 // loop_pre_header
                  _
                $region75: #{mlp_forward.1} parent=65 // loop_header
                  %s1518 = sphi 0, %s1520
                  %p1519 = scmp.ge.s32.totalorder %s1518, %s1511
                  %s1523 = sphi 0, %s1530
                  %s1524 = sphi %s1514, %s1533
                  %s1525 = sphi %s1516, %s1534
                $region76: #{mlp_forward.1} parent=65 // loop_header_branch
                  %1522 = sbr.rel (%p1519) target = $region80
                $region77: #{mlp_forward.1} parent=65 // loop_body
                  %v1526 = vld [vmem:[%s1524] sm:$0xff]
                  %1527 = vst [vmem:[%s1525] sm:$0xff] %v1526
                  %s1528 = sadd.s32 1, %s1523
                  %p1529 = scmp.ge.s32.totalorder %s1528, %s1511
                  %s1530 = scalar_select %p1529, 0, %s1528
                  %s1531 = smul.u32 %s1530, 8
                  %s1532 = smul.u32 %s1530, 8
                  %s1533 = scalar_lea.vmem %s1514, %s1531 [#allocation2]
                  %s1534 = scalar_lea.vmem %s1516, %s1532
                $region78: #{mlp_forward.1} parent=65 // loop_footer
                  %s1520 = sadd.s32 %s1518, 1
                $region79: #{mlp_forward.1} parent=65 // loop_footer_branch
                  %1517 = sbr.rel target = $region75
                $region80: #{mlp_forward.1} parent=65 // loop_exit
                  _
              $region66: #{mlp_forward.1} parent=43 // pred_fallthru
                _
              // Predicated region
              $region81: #{mlp_forward.1} parent=43 // pred_check
                _
              $region82: #{mlp_forward.1} parent=43 // pred_check_branch
                %1536 = sbr.rel target = $region84
              $region83: #{mlp_forward.1} parent=43 // pred_region
                _
              $region84: #{mlp_forward.1} parent=43 // pred_fallthru
                _
            $region44: #{mlp_forward.1} parent=39 // pred_fallthru
              _
            // Predicated region
            $region45: #{mlp_forward.1} parent=39 // pred_check
              _
            $region46: #{mlp_forward.1} parent=39 // pred_check_branch
              %1319 = sbr.rel target = $region48
            $region47: #{mlp_forward.1} parent=39 // pred_region
              %s1321 = sshrl.u32 %s1308, 5
              // While loop
              $region49: #{mlp_forward.1} parent=47 // loop_pre_header
                _
              $region50: #{mlp_forward.1} parent=47 // loop_header
                %s1323 = sphi 0, %s1325
                %p1324 = scmp.ge.s32.totalorder %s1323, %s1321
                %s1328 = sphi 0, %s1397
                %s1329 = sphi %s1301, %s1400
                %s1330 = sphi %s1312, %s1401
              $region51: #{mlp_forward.1} parent=47 // loop_header_branch
                %1327 = sbr.rel (%p1324) target = $region55
              $region52: #{mlp_forward.1} parent=47 // loop_body
                %v1331 = vld [vmem:[%s1329] sm:$0xff]
                %1332 = vst [vmem:[%s1330] sm:$0xff] %v1331
                %v1333 = vld [vmem:[%s1329 + $0x8] sm:$0xff]
                %1334 = vst [vmem:[%s1330 + $0x8] sm:$0xff] %v1333
                %v1335 = vld [vmem:[%s1329 + $0x10] sm:$0xff]
                %1336 = vst [vmem:[%s1330 + $0x10] sm:$0xff] %v1335
                %v1337 = vld [vmem:[%s1329 + $0x18] sm:$0xff]
                %1338 = vst [vmem:[%s1330 + $0x18] sm:$0xff] %v1337
                %v1339 = vld [vmem:[%s1329 + $0x20] sm:$0xff]
                %1340 = vst [vmem:[%s1330 + $0x20] sm:$0xff] %v1339
                %v1341 = vld [vmem:[%s1329 + $0x28] sm:$0xff]
                %1342 = vst [vmem:[%s1330 + $0x28] sm:$0xff] %v1341
                %v1343 = vld [vmem:[%s1329 + $0x30] sm:$0xff]
                %1344 = vst [vmem:[%s1330 + $0x30] sm:$0xff] %v1343
                %v1345 = vld [vmem:[%s1329 + $0x38] sm:$0xff]
                %1346 = vst [vmem:[%s1330 + $0x38] sm:$0xff] %v1345
                %v1347 = vld [vmem:[%s1329 + $0x40] sm:$0xff]
                %1348 = vst [vmem:[%s1330 + $0x40] sm:$0xff] %v1347
                %v1349 = vld [vmem:[%s1329 + $0x48] sm:$0xff]
                %1350 = vst [vmem:[%s1330 + $0x48] sm:$0xff] %v1349
                %v1351 = vld [vmem:[%s1329 + $0x50] sm:$0xff]
                %1352 = vst [vmem:[%s1330 + $0x50] sm:$0xff] %v1351
                %v1353 = vld [vmem:[%s1329 + $0x58] sm:$0xff]
                %1354 = vst [vmem:[%s1330 + $0x58] sm:$0xff] %v1353
                %v1355 = vld [vmem:[%s1329 + $0x60] sm:$0xff]
                %1356 = vst [vmem:[%s1330 + $0x60] sm:$0xff] %v1355
                %v1357 = vld [vmem:[%s1329 + $0x68] sm:$0xff]
                %1358 = vst [vmem:[%s1330 + $0x68] sm:$0xff] %v1357
                %v1359 = vld [vmem:[%s1329 + $0x70] sm:$0xff]
                %1360 = vst [vmem:[%s1330 + $0x70] sm:$0xff] %v1359
                %v1361 = vld [vmem:[%s1329 + $0x78] sm:$0xff]
                %1362 = vst [vmem:[%s1330 + $0x78] sm:$0xff] %v1361
                %v1363 = vld [vmem:[%s1329 + $0x80] sm:$0xff]
                %1364 = vst [vmem:[%s1330 + $0x80] sm:$0xff] %v1363
                %v1365 = vld [vmem:[%s1329 + $0x88] sm:$0xff]
                %1366 = vst [vmem:[%s1330 + $0x88] sm:$0xff] %v1365
                %v1367 = vld [vmem:[%s1329 + $0x90] sm:$0xff]
                %1368 = vst [vmem:[%s1330 + $0x90] sm:$0xff] %v1367
                %v1369 = vld [vmem:[%s1329 + $0x98] sm:$0xff]
                %1370 = vst [vmem:[%s1330 + $0x98] sm:$0xff] %v1369
                %v1371 = vld [vmem:[%s1329 + $0xa0] sm:$0xff]
                %1372 = vst [vmem:[%s1330 + $0xa0] sm:$0xff] %v1371
                %v1373 = vld [vmem:[%s1329 + $0xa8] sm:$0xff]
                %1374 = vst [vmem:[%s1330 + $0xa8] sm:$0xff] %v1373
                %v1375 = vld [vmem:[%s1329 + $0xb0] sm:$0xff]
                %1376 = vst [vmem:[%s1330 + $0xb0] sm:$0xff] %v1375
                %v1377 = vld [vmem:[%s1329 + $0xb8] sm:$0xff]
                %1378 = vst [vmem:[%s1330 + $0xb8] sm:$0xff] %v1377
                %v1379 = vld [vmem:[%s1329 + $0xc0] sm:$0xff]
                %1380 = vst [vmem:[%s1330 + $0xc0] sm:$0xff] %v1379
                %v1381 = vld [vmem:[%s1329 + $0xc8] sm:$0xff]
                %1382 = vst [vmem:[%s1330 + $0xc8] sm:$0xff] %v1381
                %v1383 = vld [vmem:[%s1329 + $0xd0] sm:$0xff]
                %1384 = vst [vmem:[%s1330 + $0xd0] sm:$0xff] %v1383
                %v1385 = vld [vmem:[%s1329 + $0xd8] sm:$0xff]
                %1386 = vst [vmem:[%s1330 + $0xd8] sm:$0xff] %v1385
                %v1387 = vld [vmem:[%s1329 + $0xe0] sm:$0xff]
                %1388 = vst [vmem:[%s1330 + $0xe0] sm:$0xff] %v1387
                %v1389 = vld [vmem:[%s1329 + $0xe8] sm:$0xff]
                %1390 = vst [vmem:[%s1330 + $0xe8] sm:$0xff] %v1389
                %v1391 = vld [vmem:[%s1329 + $0xf0] sm:$0xff]
                %1392 = vst [vmem:[%s1330 + $0xf0] sm:$0xff] %v1391
                %v1393 = vld [vmem:[%s1329 + $0xf8] sm:$0xff]
                %1394 = vst [vmem:[%s1330 + $0xf8] sm:$0xff] %v1393
                %s1395 = sadd.s32 1, %s1328
                %p1396 = scmp.ge.s32.totalorder %s1395, %s1321
                %s1397 = scalar_select %p1396, 0, %s1395
                %s1398 = smul.u32 %s1397, 256
                %s1399 = smul.u32 %s1397, 256
                %s1400 = scalar_lea.vmem %s1301, %s1398 [#allocation2]
                %s1401 = scalar_lea.vmem %s1312, %s1399
              $region53: #{mlp_forward.1} parent=47 // loop_footer
                %s1325 = sadd.s32 %s1323, 1
              $region54: #{mlp_forward.1} parent=47 // loop_footer_branch
                %1322 = sbr.rel target = $region50
              $region55: #{mlp_forward.1} parent=47 // loop_exit
                _
              %s1402 = sshrl.u32 %s1308, 5
              %s1403 = sand.u32 %s1308, 31
              %s1404 = smul.u32 %s1402, 32
              %s1405 = smul.u32 8, %s1404
              %s1406 = scalar_lea.vmem %s1301, %s1405 [#allocation2]
              %s1407 = smul.u32 8, %s1404
              %s1408 = scalar_lea.vmem %s1312, %s1407
              // While loop
              $region56: #{mlp_forward.1} parent=47 // loop_pre_header
                _
              $region57: #{mlp_forward.1} parent=47 // loop_header
                %s1410 = sphi 0, %s1412
                %p1411 = scmp.ge.s32.totalorder %s1410, %s1403
                %s1415 = sphi 0, %s1422
                %s1416 = sphi %s1406, %s1425
                %s1417 = sphi %s1408, %s1426
              $region58: #{mlp_forward.1} parent=47 // loop_header_branch
                %1414 = sbr.rel (%p1411) target = $region62
              $region59: #{mlp_forward.1} parent=47 // loop_body
                %v1418 = vld [vmem:[%s1416] sm:$0xff]
                %1419 = vst [vmem:[%s1417] sm:$0xff] %v1418
                %s1420 = sadd.s32 1, %s1415
                %p1421 = scmp.ge.s32.totalorder %s1420, %s1403
                %s1422 = scalar_select %p1421, 0, %s1420
                %s1423 = smul.u32 %s1422, 8
                %s1424 = smul.u32 %s1422, 8
                %s1425 = scalar_lea.vmem %s1406, %s1423 [#allocation2]
                %s1426 = scalar_lea.vmem %s1408, %s1424
              $region60: #{mlp_forward.1} parent=47 // loop_footer
                %s1412 = sadd.s32 %s1410, 1
              $region61: #{mlp_forward.1} parent=47 // loop_footer_branch
                %1409 = sbr.rel target = $region57
              $region62: #{mlp_forward.1} parent=47 // loop_exit
                _
            $region48: #{mlp_forward.1} parent=39 // pred_fallthru
              _
          $region40: #{mlp_forward.1} parent=35 // pred_fallthru
            _
          %1537 = vnop
        $region36: #{mlp_forward.1} parent=31 // pred_fallthru
          _
      $region32: #{mlp_forward.1} parent=5 // pred_fallthru
        _
      %p1538 = scmp.le.s32.totalorder 2, %s9
      // Predicated region
      $region85: #{mlp_forward.1} parent=5 // pred_check
        %p1539 = pneg %p1538
      $region86: #{mlp_forward.1} parent=5 // pred_check_branch
        %1541 = sbr.rel (%p1539) target = $region88
      $region87: #{mlp_forward.1} parent=5 // pred_region
        %s1542 = ssub.s32 %s9, 2
        // Predicated region
        $region89: #{mlp_forward.1} parent=87 // pred_check
          %p1543 = pneg %p106
        $region90: #{mlp_forward.1} parent=87 // pred_check_branch
          %1545 = sbr.rel (%p1543) target = $region92
        $region91: #{mlp_forward.1} parent=87 // pred_region
          %s1546 = sand.u32 %s91, 1
          %s1547 = sand.u32 %s91, 1
          %s1548 = smul.addr %s1547, 256
          %s1549 = scalar_lea.vmem [#allocation2], %s1548
        $region92: #{mlp_forward.1} parent=87 // pred_fallthru
          _
      $region88: #{mlp_forward.1} parent=5 // pred_fallthru
        _
    $region6: #{mlp_forward.1} parent=1 // loop_footer
      %s13 = sadd.s32 1, %s9
    $region7: #{mlp_forward.1} parent=1 // loop_footer_branch
      %8 = sbr.rel target = $region3
    $region8: #{mlp_forward.1} parent=1 // loop_exit
      _

</llo_original>
